<compile_context>
chip_gen: v6e
topology: v6e:2x2x1
jax: 0.10.0
libtpu: 0.0.40
codegen_flags: <defaults>
</compile_context>

<pallas_src>
import math
import functools

import jax
import jax.numpy as jnp
from jax.experimental import pallas as pl
from jax.experimental.pallas import tpu as pltpu

# ---- module-consistent hyperparameters (small) ----
EMBED_DIM = 32          # embed_dim
NUM_HEADS = 4           # num_heads
FF_HIDDEN = 64          # feed_forward_hidden
NUM_LAYERS = 3          # num_attention_layers
KEY_DIM = EMBED_DIM // NUM_HEADS
VAL_DIM = KEY_DIM
BN_EPS = 1e-5

BATCH = 2
GRAPH_SIZE = 8


# --------------------------------------------------------------------------------------
# Pallas kernel: one full MultiHeadAttentionLayer on the flattened (B*N, D) activations
#   out = BN2( y + FF(y) ),  y = BN1( x + MHA(x) )
# --------------------------------------------------------------------------------------
def mha_layer_kernel(xf_ref, wqkv_ref, wo_ref,
                     bn1w_ref, bn1b_ref,
                     ffw1_ref, ffb1_ref, ffw2_ref, ffb2_ref,
                     bn2w_ref, bn2b_ref,
                     out_ref, *, nbatch, nheads, key_dim, val_dim):
    xf = xf_ref[...]                                   # (B*N, D) f32
    bn_rows, d = xf.shape
    n = bn_rows // nbatch                              # graph_size
    hk = nheads * key_dim
    hv = nheads * val_dim
    norm = 1.0 / math.sqrt(key_dim)

    # ---------------- QKV projection: one wide MXU matmul ---------------------------
    qkv = jnp.dot(xf, wqkv_ref[...], preferred_element_type=jnp.float32)  # (B*N, 3*H*Kd)
    q_all = qkv[:, 0:hk]
    k_all = qkv[:, hk:hk + hk]
    v_all = qkv[:, hk + hk:hk + hk + hv]

    # ---------------- attention: static unroll over (batch, head), plain 2-D dots ---
    per_batch = []
    for b in range(nbatch):
        r0 = b * n
        heads_b = []
        for h in range(nheads):
            cq = h * key_dim
            cv = h * val_dim
            q_bh = q_all[r0:r0 + n, cq:cq + key_dim]          # (N, Kd)
            k_bh = k_all[r0:r0 + n, cq:cq + key_dim]          # (N, Kd)
            v_bh = v_all[r0:r0 + n, cv:cv + val_dim]          # (N, Vd)

            # compat = norm * q @ k^T   (contract last-vs-last: no explicit transpose)
            compat = norm * jax.lax.dot_general(
                q_bh, k_bh, (((1,), (1,)), ((), ())),
                preferred_element_type=jnp.float32)           # (N, N)

            m = jnp.max(compat, axis=-1, keepdims=True)
            e = jnp.exp(compat - m)
            denom = jnp.sum(e, axis=-1, keepdims=True)
            attn = e * pl.reciprocal(denom, approx=True)      # softmax(-1), EUP recip

            heads_b.append(jnp.dot(attn, v_bh,
                                   preferred_element_type=jnp.float32))  # (N, Vd)
        per_batch.append(jnp.concatenate(heads_b, axis=-1))              # (N, H*Vd)
    heads = jnp.concatenate(per_batch, axis=0)                           # (B*N, H*Vd)

    # single lane-dense output projection against W_out.view(H*Vd, D)
    mha = jnp.dot(heads, wo_ref[...], preferred_element_type=jnp.float32)  # (B*N, D)

    h1 = xf + mha                                      # skip connection

    # ---------------- BatchNorm1d over flattened (B*N, D), training-mode stats -------
    mu = jnp.mean(h1, axis=0, keepdims=True)
    var = jnp.mean((h1 - mu) ** 2, axis=0, keepdims=True)
    y = (h1 - mu) * jax.lax.rsqrt(var + BN_EPS) * bn1w_ref[...] + bn1b_ref[...]

    # ---------------- feed-forward (Linear -> ReLU -> Linear) with skip --------------
    f = jnp.dot(y, ffw1_ref[...], preferred_element_type=jnp.float32) + ffb1_ref[...]
    f = jnp.maximum(f, 0.0)
    f = jnp.dot(f, ffw2_ref[...], preferred_element_type=jnp.float32) + ffb2_ref[...]
    h2 = y + f

    # ---------------- BatchNorm1d (second) -------------------------------------------
    mu2 = jnp.mean(h2, axis=0, keepdims=True)
    var2 = jnp.mean((h2 - mu2) ** 2, axis=0, keepdims=True)
    out_ref[...] = (h2 - mu2) * jax.lax.rsqrt(var2 + BN_EPS) * bn2w_ref[...] + bn2b_ref[...]


def _vmem_spec():
    # Whole-array blocks resident in VMEM (everything here is tiny: < 64 KiB total).
    # If BATCH/GRAPH_SIZE grow, tile over batch with a BlockSpec and re-derive against
    # v7x's 64 MiB VMEM (vmem_limit_bytes via pltpu.CompilerParams).
    return pl.BlockSpec(memory_space=pltpu.MemorySpace.VMEM)


def mha_layer(x, p):
    B, N, D = x.shape
    xf = x.reshape(B * N, D)                 # free, wrapper-side layout plumbing
    args = (xf, p['wqkv'], p['wo_packed'],
            p['bn1_w'], p['bn1_b'],
            p['ff_w1'], p['ff_b1'], p['ff_w2'], p['ff_b2'],
            p['bn2_w'], p['bn2_b'])
    kernel = functools.partial(mha_layer_kernel,
                               nbatch=B, nheads=NUM_HEADS,
                               key_dim=KEY_DIM, val_dim=VAL_DIM)
    out2d = pl.pallas_call(
        kernel,
        out_shape=jax.ShapeDtypeStruct((B * N, D), jnp.float32),   # lane-dense 2-D slab
        in_specs=[_vmem_spec() for _ in args],
        out_specs=_vmem_spec(),
    )(*args)
    return out2d.reshape(B, N, D)            # free, wrapper-side reshape


def graph_attention_encoder(x, layer_params):
    # Reference quirk: every layer is applied to the ORIGINAL x and only the last
    # layer's output is returned, so layers 0..L-2 are dead work.  Running only the
    # last layer is output-identical to the reference loop and removes 2/3 of the
    # kernel launches + DMAs (perf feedback #1).
    return mha_layer(x, layer_params[-1])


# --------------------------------------------------------------------------------------
# Parameter construction (deterministic; torch-faithful shapes + packed kernel layouts)
# --------------------------------------------------------------------------------------
def init_layer_params(key):
    ks = jax.random.split(key, 8)

    def u(k, shape, bound):
        return jax.random.uniform(k, shape, jnp.float32, -bound, bound)

    stdv_k = 1.0 / math.sqrt(KEY_DIM)
    stdv_v = 1.0 / math.sqrt(VAL_DIM)
    stdv_e = 1.0 / math.sqrt(EMBED_DIM)
    stdv_f = 1.0 / math.sqrt(FF_HIDDEN)

    # torch shapes: W_query/W_key (H, D, key_dim), W_val (H, D, val_dim), W_out (H, val_dim, D)
    wq = u(ks[0], (NUM_HEADS, EMBED_DIM, KEY_DIM), stdv_k)
    wk = u(ks[1], (NUM_HEADS, EMBED_DIM, KEY_DIM), stdv_k)
    wv = u(ks[2], (NUM_HEADS, EMBED_DIM, VAL_DIM), stdv_v)
    wo = u(ks[3], (NUM_HEADS, VAL_DIM, EMBED_DIM), stdv_e)

    def pack_in(w):
        # (H, D, Kd) -> (D, H*Kd): column h*Kd + k == head h, feature k  (lane-dense)
        return jnp.transpose(w, (1, 0, 2)).reshape(EMBED_DIM, -1)

    return dict(
        # raw per-head weights (used only by the pure-JAX reference)
        wq=wq, wk=wk, wv=wv, wo=wo,
        # packed, lane-dense kernel layouts
        wqkv=jnp.concatenate([pack_in(wq), pack_in(wk), pack_in(wv)], axis=1),  # (D, 3*H*Kd)
        wo_packed=wo.reshape(NUM_HEADS * VAL_DIM, EMBED_DIM),                   # (H*Vd, D)
        # BatchNorm1d defaults: weight=1, bias=0 ((1, D) for lane broadcasting)
        bn1_w=jnp.ones((1, EMBED_DIM), jnp.float32),
        bn1_b=jnp.zeros((1, EMBED_DIM), jnp.float32),
        # nn.Linear weights stored pre-transposed as (in, out)
        ff_w1=u(ks[4], (EMBED_DIM, FF_HIDDEN), stdv_e),
        ff_b1=u(ks[5], (1, FF_HIDDEN), stdv_e),
        ff_w2=u(ks[6], (FF_HIDDEN, EMBED_DIM), stdv_f),
        ff_b2=u(ks[7], (1, EMBED_DIM), stdv_f),
        bn2_w=jnp.ones((1, EMBED_DIM), jnp.float32),
        bn2_b=jnp.zeros((1, EMBED_DIM), jnp.float32),
    )


# --------------------------------------------------------------------------------------
# Pure-JAX reference (torch-faithful per-head math, full layer loop) for cross-check
# --------------------------------------------------------------------------------------
def ref_layer(x, p):
    B, N, D = x.shape
    xf = x.reshape(B * N, D)
    norm = 1.0 / math.sqrt(KEY_DIM)
    heads = []
    for h in range(NUM_HEADS):
        q = (xf @ p['wq'][h]).reshape(B, N, KEY_DIM)
        k = (xf @ p['wk'][h]).reshape(B, N, KEY_DIM)
        v = (xf @ p['wv'][h]).reshape(B, N, VAL_DIM)
        compat = norm * jnp.einsum('bqk,bnk->bqn', q, k)
        attn = jax.nn.softmax(compat, axis=-1)
        heads.append(jnp.einsum('bqn,bnv->bqv', attn, v))          # (B, N, Vd)
    heads = jnp.stack(heads, axis=0)                               # (H, B, N, Vd)
    hc = jnp.transpose(heads, (1, 2, 0, 3)).reshape(B * N, NUM_HEADS * VAL_DIM)
    mha = hc @ p['wo'].reshape(NUM_HEADS * VAL_DIM, D)
    h1 = xf + mha
    mu = h1.mean(0, keepdims=True)
    var = ((h1 - mu) ** 2).mean(0, keepdims=True)
    y = (h1 - mu) / jnp.sqrt(var + BN_EPS) * p['bn1_w'] + p['bn1_b']
    f = jnp.maximum(y @ p['ff_w1'] + p['ff_b1'], 0.0) @ p['ff_w2'] + p['ff_b2']
    h2 = y + f
    mu2 = h2.mean(0, keepdims=True)
    var2 = ((h2 - mu2) ** 2).mean(0, keepdims=True)
    z = (h2 - mu2) / jnp.sqrt(var2 + BN_EPS) * p['bn2_w'] + p['bn2_b']
    return z.reshape(B, N, D)


def ref_encoder(x, layer_params):
    out = None
    for p in layer_params:        # faithful to the reference: all layers on original x
        out = ref_layer(x, p)
    return out


if __name__ == "__main__":
    key = jax.random.PRNGKey(0)
    kx, *layer_keys = jax.random.split(key, NUM_LAYERS + 1)

    x = jax.random.normal(kx, (BATCH, GRAPH_SIZE, EMBED_DIM), jnp.float32)
    layer_params = [init_layer_params(k) for k in layer_keys]

    out = graph_attention_encoder(x, layer_params)
    out = jax.block_until_ready(out)

    ref = ref_encoder(x, layer_params)
    assert out.shape == (BATCH, GRAPH_SIZE, EMBED_DIM)
    assert bool(jnp.all(jnp.isfinite(out)))
    assert bool(jnp.allclose(out, ref, atol=1e-2, rtol=1e-2))

    print("KERNEL_OK")
</pallas_src>

<mosaic_0001>
module attributes {stable_mosaic.version = 11 : i64} {
  func.func @mha_layer_kernel(%arg0: memref<16x32xf32, #tpu.memory_space<vmem>>, %arg1: memref<32x96xf32, #tpu.memory_space<vmem>>, %arg2: memref<32x32xf32, #tpu.memory_space<vmem>>, %arg3: memref<1x32xf32, #tpu.memory_space<vmem>>, %arg4: memref<1x32xf32, #tpu.memory_space<vmem>>, %arg5: memref<32x64xf32, #tpu.memory_space<vmem>>, %arg6: memref<1x64xf32, #tpu.memory_space<vmem>>, %arg7: memref<64x32xf32, #tpu.memory_space<vmem>>, %arg8: memref<1x32xf32, #tpu.memory_space<vmem>>, %arg9: memref<1x32xf32, #tpu.memory_space<vmem>>, %arg10: memref<1x32xf32, #tpu.memory_space<vmem>>, %arg11: memref<16x32xf32, #tpu.memory_space<vmem>>) attributes {dimension_semantics = [], scalar_prefetch = 0 : i64, scratch_operands = 0 : i64, tpu.core_type = #tpu.core_type<tc>} {
    %c0 = arith.constant 0 : index
    %c0_0 = arith.constant 0 : index
    %0 = vector.load %arg0[%c0, %c0_0] : memref<16x32xf32, #tpu.memory_space<vmem>>, vector<16x32xf32>
    %c0_1 = arith.constant 0 : index
    %c0_2 = arith.constant 0 : index
    %1 = vector.load %arg1[%c0_1, %c0_2] : memref<32x96xf32, #tpu.memory_space<vmem>>, vector<32x96xf32>
    %cst = arith.constant dense<0.000000e+00> : vector<16x96xf32>
    %2 = tpu.matmul %0, %1, %cst {dimension_numbers = #tpu.dot_dimension_numbers<[1], [0], [0], [1], [0, 0, 1, 1], [], []>} : vector<16x32xf32>, vector<32x96xf32>, vector<16x96xf32> -> vector<16x96xf32>
    %3 = vector.extract_strided_slice %2 {offsets = [0, 0], sizes = [16, 32], strides = [1, 1]} : vector<16x96xf32> to vector<16x32xf32>
    %4 = vector.extract_strided_slice %2 {offsets = [0, 32], sizes = [16, 32], strides = [1, 1]} : vector<16x96xf32> to vector<16x32xf32>
    %5 = vector.extract_strided_slice %2 {offsets = [0, 64], sizes = [16, 32], strides = [1, 1]} : vector<16x96xf32> to vector<16x32xf32>
    %6 = vector.extract_strided_slice %3 {offsets = [0, 0], sizes = [8, 8], strides = [1, 1]} : vector<16x32xf32> to vector<8x8xf32>
    %7 = vector.extract_strided_slice %4 {offsets = [0, 0], sizes = [8, 8], strides = [1, 1]} : vector<16x32xf32> to vector<8x8xf32>
    %8 = vector.extract_strided_slice %5 {offsets = [0, 0], sizes = [8, 8], strides = [1, 1]} : vector<16x32xf32> to vector<8x8xf32>
    %cst_3 = arith.constant dense<0.000000e+00> : vector<8x8xf32>
    %9 = tpu.matmul %6, %7, %cst_3 {dimension_numbers = #tpu.dot_dimension_numbers<[1], [1], [0], [0], [0, 0, 1, 0], [], []>} : vector<8x8xf32>, vector<8x8xf32>, vector<8x8xf32> -> vector<8x8xf32>
    %cst_4 = arith.constant 0.353553385 : f32
    %10 = vector.broadcast %cst_4 : f32 to vector<8x8xf32>
    %11 = arith.mulf %10, %9 : vector<8x8xf32>
    %cst_5 = arith.constant dense<0xFF800000> : vector<8xf32>
    %12 = vector.multi_reduction <maximumf>, %11, %cst_5 [1] : vector<8x8xf32> to vector<8xf32>
    %13 = vector.shape_cast %12 : vector<8xf32> to vector<8x1xf32>
    %14 = vector.broadcast %13 : vector<8x1xf32> to vector<8x8xf32>
    %15 = arith.subf %11, %14 : vector<8x8xf32>
    %16 = math.exp %15 : vector<8x8xf32>
    %cst_6 = arith.constant dense<0.000000e+00> : vector<8xf32>
    %17 = vector.multi_reduction <add>, %16, %cst_6 [1] : vector<8x8xf32> to vector<8xf32>
    %18 = vector.shape_cast %17 : vector<8xf32> to vector<8x1xf32>
    %19 = tpu.reciprocal %18 {approx = true} : vector<8x1xf32> -> vector<8x1xf32>
    %20 = vector.broadcast %19 : vector<8x1xf32> to vector<8x8xf32>
    %21 = arith.mulf %16, %20 : vector<8x8xf32>
    %cst_7 = arith.constant dense<0.000000e+00> : vector<8x8xf32>
    %22 = tpu.matmul %21, %8, %cst_7 {dimension_numbers = #tpu.dot_dimension_numbers<[1], [0], [0], [1], [0, 0, 1, 1], [], []>} : vector<8x8xf32>, vector<8x8xf32>, vector<8x8xf32> -> vector<8x8xf32>
    %23 = vector.extract_strided_slice %3 {offsets = [0, 8], sizes = [8, 8], strides = [1, 1]} : vector<16x32xf32> to vector<8x8xf32>
    %24 = vector.extract_strided_slice %4 {offsets = [0, 8], sizes = [8, 8], strides = [1, 1]} : vector<16x32xf32> to vector<8x8xf32>
    %25 = vector.extract_strided_slice %5 {offsets = [0, 8], sizes = [8, 8], strides = [1, 1]} : vector<16x32xf32> to vector<8x8xf32>
    %cst_8 = arith.constant dense<0.000000e+00> : vector<8x8xf32>
    %26 = tpu.matmul %23, %24, %cst_8 {dimension_numbers = #tpu.dot_dimension_numbers<[1], [1], [0], [0], [0, 0, 1, 0], [], []>} : vector<8x8xf32>, vector<8x8xf32>, vector<8x8xf32> -> vector<8x8xf32>
    %cst_9 = arith.constant 0.353553385 : f32
    %27 = vector.broadcast %cst_9 : f32 to vector<8x8xf32>
    %28 = arith.mulf %27, %26 : vector<8x8xf32>
    %cst_10 = arith.constant dense<0xFF800000> : vector<8xf32>
    %29 = vector.multi_reduction <maximumf>, %28, %cst_10 [1] : vector<8x8xf32> to vector<8xf32>
    %30 = vector.shape_cast %29 : vector<8xf32> to vector<8x1xf32>
    %31 = vector.broadcast %30 : vector<8x1xf32> to vector<8x8xf32>
    %32 = arith.subf %28, %31 : vector<8x8xf32>
    %33 = math.exp %32 : vector<8x8xf32>
    %cst_11 = arith.constant dense<0.000000e+00> : vector<8xf32>
    %34 = vector.multi_reduction <add>, %33, %cst_11 [1] : vector<8x8xf32> to vector<8xf32>
    %35 = vector.shape_cast %34 : vector<8xf32> to vector<8x1xf32>
    %36 = tpu.reciprocal %35 {approx = true} : vector<8x1xf32> -> vector<8x1xf32>
    %37 = vector.broadcast %36 : vector<8x1xf32> to vector<8x8xf32>
    %38 = arith.mulf %33, %37 : vector<8x8xf32>
    %cst_12 = arith.constant dense<0.000000e+00> : vector<8x8xf32>
    %39 = tpu.matmul %38, %25, %cst_12 {dimension_numbers = #tpu.dot_dimension_numbers<[1], [0], [0], [1], [0, 0, 1, 1], [], []>} : vector<8x8xf32>, vector<8x8xf32>, vector<8x8xf32> -> vector<8x8xf32>
    %40 = vector.extract_strided_slice %3 {offsets = [0, 16], sizes = [8, 8], strides = [1, 1]} : vector<16x32xf32> to vector<8x8xf32>
    %41 = vector.extract_strided_slice %4 {offsets = [0, 16], sizes = [8, 8], strides = [1, 1]} : vector<16x32xf32> to vector<8x8xf32>
    %42 = vector.extract_strided_slice %5 {offsets = [0, 16], sizes = [8, 8], strides = [1, 1]} : vector<16x32xf32> to vector<8x8xf32>
    %cst_13 = arith.constant dense<0.000000e+00> : vector<8x8xf32>
    %43 = tpu.matmul %40, %41, %cst_13 {dimension_numbers = #tpu.dot_dimension_numbers<[1], [1], [0], [0], [0, 0, 1, 0], [], []>} : vector<8x8xf32>, vector<8x8xf32>, vector<8x8xf32> -> vector<8x8xf32>
    %cst_14 = arith.constant 0.353553385 : f32
    %44 = vector.broadcast %cst_14 : f32 to vector<8x8xf32>
    %45 = arith.mulf %44, %43 : vector<8x8xf32>
    %cst_15 = arith.constant dense<0xFF800000> : vector<8xf32>
    %46 = vector.multi_reduction <maximumf>, %45, %cst_15 [1] : vector<8x8xf32> to vector<8xf32>
    %47 = vector.shape_cast %46 : vector<8xf32> to vector<8x1xf32>
    %48 = vector.broadcast %47 : vector<8x1xf32> to vector<8x8xf32>
    %49 = arith.subf %45, %48 : vector<8x8xf32>
    %50 = math.exp %49 : vector<8x8xf32>
    %cst_16 = arith.constant dense<0.000000e+00> : vector<8xf32>
    %51 = vector.multi_reduction <add>, %50, %cst_16 [1] : vector<8x8xf32> to vector<8xf32>
    %52 = vector.shape_cast %51 : vector<8xf32> to vector<8x1xf32>
    %53 = tpu.reciprocal %52 {approx = true} : vector<8x1xf32> -> vector<8x1xf32>
    %54 = vector.broadcast %53 : vector<8x1xf32> to vector<8x8xf32>
    %55 = arith.mulf %50, %54 : vector<8x8xf32>
    %cst_17 = arith.constant dense<0.000000e+00> : vector<8x8xf32>
    %56 = tpu.matmul %55, %42, %cst_17 {dimension_numbers = #tpu.dot_dimension_numbers<[1], [0], [0], [1], [0, 0, 1, 1], [], []>} : vector<8x8xf32>, vector<8x8xf32>, vector<8x8xf32> -> vector<8x8xf32>
    %57 = vector.extract_strided_slice %3 {offsets = [0, 24], sizes = [8, 8], strides = [1, 1]} : vector<16x32xf32> to vector<8x8xf32>
    %58 = vector.extract_strided_slice %4 {offsets = [0, 24], sizes = [8, 8], strides = [1, 1]} : vector<16x32xf32> to vector<8x8xf32>
    %59 = vector.extract_strided_slice %5 {offsets = [0, 24], sizes = [8, 8], strides = [1, 1]} : vector<16x32xf32> to vector<8x8xf32>
    %cst_18 = arith.constant dense<0.000000e+00> : vector<8x8xf32>
    %60 = tpu.matmul %57, %58, %cst_18 {dimension_numbers = #tpu.dot_dimension_numbers<[1], [1], [0], [0], [0, 0, 1, 0], [], []>} : vector<8x8xf32>, vector<8x8xf32>, vector<8x8xf32> -> vector<8x8xf32>
    %cst_19 = arith.constant 0.353553385 : f32
    %61 = vector.broadcast %cst_19 : f32 to vector<8x8xf32>
    %62 = arith.mulf %61, %60 : vector<8x8xf32>
    %cst_20 = arith.constant dense<0xFF800000> : vector<8xf32>
    %63 = vector.multi_reduction <maximumf>, %62, %cst_20 [1] : vector<8x8xf32> to vector<8xf32>
    %64 = vector.shape_cast %63 : vector<8xf32> to vector<8x1xf32>
    %65 = vector.broadcast %64 : vector<8x1xf32> to vector<8x8xf32>
    %66 = arith.subf %62, %65 : vector<8x8xf32>
    %67 = math.exp %66 : vector<8x8xf32>
    %cst_21 = arith.constant dense<0.000000e+00> : vector<8xf32>
    %68 = vector.multi_reduction <add>, %67, %cst_21 [1] : vector<8x8xf32> to vector<8xf32>
    %69 = vector.shape_cast %68 : vector<8xf32> to vector<8x1xf32>
    %70 = tpu.reciprocal %69 {approx = true} : vector<8x1xf32> -> vector<8x1xf32>
    %71 = vector.broadcast %70 : vector<8x1xf32> to vector<8x8xf32>
    %72 = arith.mulf %67, %71 : vector<8x8xf32>
    %cst_22 = arith.constant dense<0.000000e+00> : vector<8x8xf32>
    %73 = tpu.matmul %72, %59, %cst_22 {dimension_numbers = #tpu.dot_dimension_numbers<[1], [0], [0], [1], [0, 0, 1, 1], [], []>} : vector<8x8xf32>, vector<8x8xf32>, vector<8x8xf32> -> vector<8x8xf32>
    %74 = tpu.concatenate %22, %39, %56, %73 in 1 : vector<8x8xf32>, vector<8x8xf32>, vector<8x8xf32>, vector<8x8xf32> -> vector<8x32xf32>
    %75 = vector.extract_strided_slice %3 {offsets = [8, 0], sizes = [8, 8], strides = [1, 1]} : vector<16x32xf32> to vector<8x8xf32>
    %76 = vector.extract_strided_slice %4 {offsets = [8, 0], sizes = [8, 8], strides = [1, 1]} : vector<16x32xf32> to vector<8x8xf32>
    %77 = vector.extract_strided_slice %5 {offsets = [8, 0], sizes = [8, 8], strides = [1, 1]} : vector<16x32xf32> to vector<8x8xf32>
    %cst_23 = arith.constant dense<0.000000e+00> : vector<8x8xf32>
    %78 = tpu.matmul %75, %76, %cst_23 {dimension_numbers = #tpu.dot_dimension_numbers<[1], [1], [0], [0], [0, 0, 1, 0], [], []>} : vector<8x8xf32>, vector<8x8xf32>, vector<8x8xf32> -> vector<8x8xf32>
    %cst_24 = arith.constant 0.353553385 : f32
    %79 = vector.broadcast %cst_24 : f32 to vector<8x8xf32>
    %80 = arith.mulf %79, %78 : vector<8x8xf32>
    %cst_25 = arith.constant dense<0xFF800000> : vector<8xf32>
    %81 = vector.multi_reduction <maximumf>, %80, %cst_25 [1] : vector<8x8xf32> to vector<8xf32>
    %82 = vector.shape_cast %81 : vector<8xf32> to vector<8x1xf32>
    %83 = vector.broadcast %82 : vector<8x1xf32> to vector<8x8xf32>
    %84 = arith.subf %80, %83 : vector<8x8xf32>
    %85 = math.exp %84 : vector<8x8xf32>
    %cst_26 = arith.constant dense<0.000000e+00> : vector<8xf32>
    %86 = vector.multi_reduction <add>, %85, %cst_26 [1] : vector<8x8xf32> to vector<8xf32>
    %87 = vector.shape_cast %86 : vector<8xf32> to vector<8x1xf32>
    %88 = tpu.reciprocal %87 {approx = true} : vector<8x1xf32> -> vector<8x1xf32>
    %89 = vector.broadcast %88 : vector<8x1xf32> to vector<8x8xf32>
    %90 = arith.mulf %85, %89 : vector<8x8xf32>
    %cst_27 = arith.constant dense<0.000000e+00> : vector<8x8xf32>
    %91 = tpu.matmul %90, %77, %cst_27 {dimension_numbers = #tpu.dot_dimension_numbers<[1], [0], [0], [1], [0, 0, 1, 1], [], []>} : vector<8x8xf32>, vector<8x8xf32>, vector<8x8xf32> -> vector<8x8xf32>
    %92 = vector.extract_strided_slice %3 {offsets = [8, 8], sizes = [8, 8], strides = [1, 1]} : vector<16x32xf32> to vector<8x8xf32>
    %93 = vector.extract_strided_slice %4 {offsets = [8, 8], sizes = [8, 8], strides = [1, 1]} : vector<16x32xf32> to vector<8x8xf32>
    %94 = vector.extract_strided_slice %5 {offsets = [8, 8], sizes = [8, 8], strides = [1, 1]} : vector<16x32xf32> to vector<8x8xf32>
    %cst_28 = arith.constant dense<0.000000e+00> : vector<8x8xf32>
    %95 = tpu.matmul %92, %93, %cst_28 {dimension_numbers = #tpu.dot_dimension_numbers<[1], [1], [0], [0], [0, 0, 1, 0], [], []>} : vector<8x8xf32>, vector<8x8xf32>, vector<8x8xf32> -> vector<8x8xf32>
    %cst_29 = arith.constant 0.353553385 : f32
    %96 = vector.broadcast %cst_29 : f32 to vector<8x8xf32>
    %97 = arith.mulf %96, %95 : vector<8x8xf32>
    %cst_30 = arith.constant dense<0xFF800000> : vector<8xf32>
    %98 = vector.multi_reduction <maximumf>, %97, %cst_30 [1] : vector<8x8xf32> to vector<8xf32>
    %99 = vector.shape_cast %98 : vector<8xf32> to vector<8x1xf32>
    %100 = vector.broadcast %99 : vector<8x1xf32> to vector<8x8xf32>
    %101 = arith.subf %97, %100 : vector<8x8xf32>
    %102 = math.exp %101 : vector<8x8xf32>
    %cst_31 = arith.constant dense<0.000000e+00> : vector<8xf32>
    %103 = vector.multi_reduction <add>, %102, %cst_31 [1] : vector<8x8xf32> to vector<8xf32>
    %104 = vector.shape_cast %103 : vector<8xf32> to vector<8x1xf32>
    %105 = tpu.reciprocal %104 {approx = true} : vector<8x1xf32> -> vector<8x1xf32>
    %106 = vector.broadcast %105 : vector<8x1xf32> to vector<8x8xf32>
    %107 = arith.mulf %102, %106 : vector<8x8xf32>
    %cst_32 = arith.constant dense<0.000000e+00> : vector<8x8xf32>
    %108 = tpu.matmul %107, %94, %cst_32 {dimension_numbers = #tpu.dot_dimension_numbers<[1], [0], [0], [1], [0, 0, 1, 1], [], []>} : vector<8x8xf32>, vector<8x8xf32>, vector<8x8xf32> -> vector<8x8xf32>
    %109 = vector.extract_strided_slice %3 {offsets = [8, 16], sizes = [8, 8], strides = [1, 1]} : vector<16x32xf32> to vector<8x8xf32>
    %110 = vector.extract_strided_slice %4 {offsets = [8, 16], sizes = [8, 8], strides = [1, 1]} : vector<16x32xf32> to vector<8x8xf32>
    %111 = vector.extract_strided_slice %5 {offsets = [8, 16], sizes = [8, 8], strides = [1, 1]} : vector<16x32xf32> to vector<8x8xf32>
    %cst_33 = arith.constant dense<0.000000e+00> : vector<8x8xf32>
    %112 = tpu.matmul %109, %110, %cst_33 {dimension_numbers = #tpu.dot_dimension_numbers<[1], [1], [0], [0], [0, 0, 1, 0], [], []>} : vector<8x8xf32>, vector<8x8xf32>, vector<8x8xf32> -> vector<8x8xf32>
    %cst_34 = arith.constant 0.353553385 : f32
    %113 = vector.broadcast %cst_34 : f32 to vector<8x8xf32>
    %114 = arith.mulf %113, %112 : vector<8x8xf32>
    %cst_35 = arith.constant dense<0xFF800000> : vector<8xf32>
    %115 = vector.multi_reduction <maximumf>, %114, %cst_35 [1] : vector<8x8xf32> to vector<8xf32>
    %116 = vector.shape_cast %115 : vector<8xf32> to vector<8x1xf32>
    %117 = vector.broadcast %116 : vector<8x1xf32> to vector<8x8xf32>
    %118 = arith.subf %114, %117 : vector<8x8xf32>
    %119 = math.exp %118 : vector<8x8xf32>
    %cst_36 = arith.constant dense<0.000000e+00> : vector<8xf32>
    %120 = vector.multi_reduction <add>, %119, %cst_36 [1] : vector<8x8xf32> to vector<8xf32>
    %121 = vector.shape_cast %120 : vector<8xf32> to vector<8x1xf32>
    %122 = tpu.reciprocal %121 {approx = true} : vector<8x1xf32> -> vector<8x1xf32>
    %123 = vector.broadcast %122 : vector<8x1xf32> to vector<8x8xf32>
    %124 = arith.mulf %119, %123 : vector<8x8xf32>
    %cst_37 = arith.constant dense<0.000000e+00> : vector<8x8xf32>
    %125 = tpu.matmul %124, %111, %cst_37 {dimension_numbers = #tpu.dot_dimension_numbers<[1], [0], [0], [1], [0, 0, 1, 1], [], []>} : vector<8x8xf32>, vector<8x8xf32>, vector<8x8xf32> -> vector<8x8xf32>
    %126 = vector.extract_strided_slice %3 {offsets = [8, 24], sizes = [8, 8], strides = [1, 1]} : vector<16x32xf32> to vector<8x8xf32>
    %127 = vector.extract_strided_slice %4 {offsets = [8, 24], sizes = [8, 8], strides = [1, 1]} : vector<16x32xf32> to vector<8x8xf32>
    %128 = vector.extract_strided_slice %5 {offsets = [8, 24], sizes = [8, 8], strides = [1, 1]} : vector<16x32xf32> to vector<8x8xf32>
    %cst_38 = arith.constant dense<0.000000e+00> : vector<8x8xf32>
    %129 = tpu.matmul %126, %127, %cst_38 {dimension_numbers = #tpu.dot_dimension_numbers<[1], [1], [0], [0], [0, 0, 1, 0], [], []>} : vector<8x8xf32>, vector<8x8xf32>, vector<8x8xf32> -> vector<8x8xf32>
    %cst_39 = arith.constant 0.353553385 : f32
    %130 = vector.broadcast %cst_39 : f32 to vector<8x8xf32>
    %131 = arith.mulf %130, %129 : vector<8x8xf32>
    %cst_40 = arith.constant dense<0xFF800000> : vector<8xf32>
    %132 = vector.multi_reduction <maximumf>, %131, %cst_40 [1] : vector<8x8xf32> to vector<8xf32>
    %133 = vector.shape_cast %132 : vector<8xf32> to vector<8x1xf32>
    %134 = vector.broadcast %133 : vector<8x1xf32> to vector<8x8xf32>
    %135 = arith.subf %131, %134 : vector<8x8xf32>
    %136 = math.exp %135 : vector<8x8xf32>
    %cst_41 = arith.constant dense<0.000000e+00> : vector<8xf32>
    %137 = vector.multi_reduction <add>, %136, %cst_41 [1] : vector<8x8xf32> to vector<8xf32>
    %138 = vector.shape_cast %137 : vector<8xf32> to vector<8x1xf32>
    %139 = tpu.reciprocal %138 {approx = true} : vector<8x1xf32> -> vector<8x1xf32>
    %140 = vector.broadcast %139 : vector<8x1xf32> to vector<8x8xf32>
    %141 = arith.mulf %136, %140 : vector<8x8xf32>
    %cst_42 = arith.constant dense<0.000000e+00> : vector<8x8xf32>
    %142 = tpu.matmul %141, %128, %cst_42 {dimension_numbers = #tpu.dot_dimension_numbers<[1], [0], [0], [1], [0, 0, 1, 1], [], []>} : vector<8x8xf32>, vector<8x8xf32>, vector<8x8xf32> -> vector<8x8xf32>
    %143 = tpu.concatenate %91, %108, %125, %142 in 1 : vector<8x8xf32>, vector<8x8xf32>, vector<8x8xf32>, vector<8x8xf32> -> vector<8x32xf32>
    %144 = tpu.concatenate %74, %143 in 0 : vector<8x32xf32>, vector<8x32xf32> -> vector<16x32xf32>
    %c0_43 = arith.constant 0 : index
    %c0_44 = arith.constant 0 : index
    %145 = vector.load %arg2[%c0_43, %c0_44] : memref<32x32xf32, #tpu.memory_space<vmem>>, vector<32x32xf32>
    %cst_45 = arith.constant dense<0.000000e+00> : vector<16x32xf32>
    %146 = tpu.matmul %144, %145, %cst_45 {dimension_numbers = #tpu.dot_dimension_numbers<[1], [0], [0], [1], [0, 0, 1, 1], [], []>} : vector<16x32xf32>, vector<32x32xf32>, vector<16x32xf32> -> vector<16x32xf32>
    %147 = arith.addf %0, %146 : vector<16x32xf32>
    %cst_46 = arith.constant dense<0.000000e+00> : vector<32xf32>
    %148 = vector.multi_reduction <add>, %147, %cst_46 [0] : vector<16x32xf32> to vector<32xf32>
    %149 = vector.shape_cast %148 : vector<32xf32> to vector<1x32xf32>
    %cst_47 = arith.constant 1.600000e+01 : f32
    %150 = vector.broadcast %cst_47 : f32 to vector<1x32xf32>
    %151 = arith.divf %149, %150 : vector<1x32xf32>
    %152 = vector.broadcast %151 : vector<1x32xf32> to vector<16x32xf32>
    %153 = arith.subf %147, %152 : vector<16x32xf32>
    %154 = arith.mulf %153, %153 : vector<16x32xf32>
    %cst_48 = arith.constant dense<0.000000e+00> : vector<32xf32>
    %155 = vector.multi_reduction <add>, %154, %cst_48 [0] : vector<16x32xf32> to vector<32xf32>
    %156 = vector.shape_cast %155 : vector<32xf32> to vector<1x32xf32>
    %cst_49 = arith.constant 1.600000e+01 : f32
    %157 = vector.broadcast %cst_49 : f32 to vector<1x32xf32>
    %158 = arith.divf %156, %157 : vector<1x32xf32>
    %159 = vector.broadcast %151 : vector<1x32xf32> to vector<16x32xf32>
    %160 = arith.subf %147, %159 : vector<16x32xf32>
    %cst_50 = arith.constant 9.99999974E-6 : f32
    %161 = vector.broadcast %cst_50 : f32 to vector<1x32xf32>
    %162 = arith.addf %158, %161 : vector<1x32xf32>
    %163 = math.rsqrt %162 : vector<1x32xf32>
    %164 = vector.broadcast %163 : vector<1x32xf32> to vector<16x32xf32>
    %165 = arith.mulf %160, %164 : vector<16x32xf32>
    %c0_51 = arith.constant 0 : index
    %c0_52 = arith.constant 0 : index
    %166 = vector.load %arg3[%c0_51, %c0_52] : memref<1x32xf32, #tpu.memory_space<vmem>>, vector<1x32xf32>
    %167 = vector.broadcast %166 : vector<1x32xf32> to vector<16x32xf32>
    %168 = arith.mulf %165, %167 : vector<16x32xf32>
    %c0_53 = arith.constant 0 : index
    %c0_54 = arith.constant 0 : index
    %169 = vector.load %arg4[%c0_53, %c0_54] : memref<1x32xf32, #tpu.memory_space<vmem>>, vector<1x32xf32>
    %170 = vector.broadcast %169 : vector<1x32xf32> to vector<16x32xf32>
    %171 = arith.addf %168, %170 : vector<16x32xf32>
    %c0_55 = arith.constant 0 : index
    %c0_56 = arith.constant 0 : index
    %172 = vector.load %arg5[%c0_55, %c0_56] : memref<32x64xf32, #tpu.memory_space<vmem>>, vector<32x64xf32>
    %cst_57 = arith.constant dense<0.000000e+00> : vector<16x64xf32>
    %173 = tpu.matmul %171, %172, %cst_57 {dimension_numbers = #tpu.dot_dimension_numbers<[1], [0], [0], [1], [0, 0, 1, 1], [], []>} : vector<16x32xf32>, vector<32x64xf32>, vector<16x64xf32> -> vector<16x64xf32>
    %c0_58 = arith.constant 0 : index
    %c0_59 = arith.constant 0 : index
    %174 = vector.load %arg6[%c0_58, %c0_59] : memref<1x64xf32, #tpu.memory_space<vmem>>, vector<1x64xf32>
    %175 = vector.broadcast %174 : vector<1x64xf32> to vector<16x64xf32>
    %176 = arith.addf %173, %175 : vector<16x64xf32>
    %cst_60 = arith.constant 0.000000e+00 : f32
    %177 = vector.broadcast %cst_60 : f32 to vector<16x64xf32>
    %178 = arith.maximumf %176, %177 : vector<16x64xf32>
    %c0_61 = arith.constant 0 : index
    %c0_62 = arith.constant 0 : index
    %179 = vector.load %arg7[%c0_61, %c0_62] : memref<64x32xf32, #tpu.memory_space<vmem>>, vector<64x32xf32>
    %cst_63 = arith.constant dense<0.000000e+00> : vector<16x32xf32>
    %180 = tpu.matmul %178, %179, %cst_63 {dimension_numbers = #tpu.dot_dimension_numbers<[1], [0], [0], [1], [0, 0, 1, 1], [], []>} : vector<16x64xf32>, vector<64x32xf32>, vector<16x32xf32> -> vector<16x32xf32>
    %c0_64 = arith.constant 0 : index
    %c0_65 = arith.constant 0 : index
    %181 = vector.load %arg8[%c0_64, %c0_65] : memref<1x32xf32, #tpu.memory_space<vmem>>, vector<1x32xf32>
    %182 = vector.broadcast %181 : vector<1x32xf32> to vector<16x32xf32>
    %183 = arith.addf %180, %182 : vector<16x32xf32>
    %184 = arith.addf %171, %183 : vector<16x32xf32>
    %cst_66 = arith.constant dense<0.000000e+00> : vector<32xf32>
    %185 = vector.multi_reduction <add>, %184, %cst_66 [0] : vector<16x32xf32> to vector<32xf32>
    %186 = vector.shape_cast %185 : vector<32xf32> to vector<1x32xf32>
    %cst_67 = arith.constant 1.600000e+01 : f32
    %187 = vector.broadcast %cst_67 : f32 to vector<1x32xf32>
    %188 = arith.divf %186, %187 : vector<1x32xf32>
    %189 = vector.broadcast %188 : vector<1x32xf32> to vector<16x32xf32>
    %190 = arith.subf %184, %189 : vector<16x32xf32>
    %191 = arith.mulf %190, %190 : vector<16x32xf32>
    %cst_68 = arith.constant dense<0.000000e+00> : vector<32xf32>
    %192 = vector.multi_reduction <add>, %191, %cst_68 [0] : vector<16x32xf32> to vector<32xf32>
    %193 = vector.shape_cast %192 : vector<32xf32> to vector<1x32xf32>
    %cst_69 = arith.constant 1.600000e+01 : f32
    %194 = vector.broadcast %cst_69 : f32 to vector<1x32xf32>
    %195 = arith.divf %193, %194 : vector<1x32xf32>
    %196 = vector.broadcast %188 : vector<1x32xf32> to vector<16x32xf32>
    %197 = arith.subf %184, %196 : vector<16x32xf32>
    %cst_70 = arith.constant 9.99999974E-6 : f32
    %198 = vector.broadcast %cst_70 : f32 to vector<1x32xf32>
    %199 = arith.addf %195, %198 : vector<1x32xf32>
    %200 = math.rsqrt %199 : vector<1x32xf32>
    %201 = vector.broadcast %200 : vector<1x32xf32> to vector<16x32xf32>
    %202 = arith.mulf %197, %201 : vector<16x32xf32>
    %c0_71 = arith.constant 0 : index
    %c0_72 = arith.constant 0 : index
    %203 = vector.load %arg9[%c0_71, %c0_72] : memref<1x32xf32, #tpu.memory_space<vmem>>, vector<1x32xf32>
    %204 = vector.broadcast %203 : vector<1x32xf32> to vector<16x32xf32>
    %205 = arith.mulf %202, %204 : vector<16x32xf32>
    %c0_73 = arith.constant 0 : index
    %c0_74 = arith.constant 0 : index
    %206 = vector.load %arg10[%c0_73, %c0_74] : memref<1x32xf32, #tpu.memory_space<vmem>>, vector<1x32xf32>
    %207 = vector.broadcast %206 : vector<1x32xf32> to vector<16x32xf32>
    %208 = arith.addf %205, %207 : vector<16x32xf32>
    %c0_75 = arith.constant 0 : index
    %c0_76 = arith.constant 0 : index
    %209 = vector.load %arg11[%c0_75, %c0_76] : memref<16x32xf32, #tpu.memory_space<vmem>>, vector<16x32xf32>
    tpu.vector_store %arg11[%c0_75, %c0_76], %208 {strides = array<i32>} : memref<16x32xf32, #tpu.memory_space<vmem>>, vector<16x32xf32>,
    return
  }
}

</mosaic_0001>

<llo_original>
// kernel: tpu_custom_call.1
$region0: #{tpu_custom_call.1}
  #allocation0 [shape = 'u32[]', space=smem, size = 0x4, offset = 0x4, fixed_abs, tag = 'smem constant byte address 0x4 - core index']
  #allocation1 [shape = 'u32[144,128]{1,0:T(1,128)}', space=vmem, size = 0x12000, scoped, tag = 'internal scratch']
  %s0 = inlined_call_operand.hbm [shape: f32[16,32], index: 0, kind: input, shape index: {}]
  %s1 = inlined_call_operand.vmem [shape: f32[32,96], index: 1, kind: input, shape index: {}]
  %s2 = inlined_call_operand.vmem [shape: f32[32,32], index: 2, kind: input, shape index: {}]
  %s3 = inlined_call_operand.vmem [shape: f32[1,32], index: 3, kind: input, shape index: {}]
  %s4 = inlined_call_operand.vmem [shape: f32[1,32], index: 4, kind: input, shape index: {}]
  %s5 = inlined_call_operand.vmem [shape: f32[32,64], index: 5, kind: input, shape index: {}]
  %s6 = inlined_call_operand.vmem [shape: f32[1,64], index: 6, kind: input, shape index: {}]
  %s7 = inlined_call_operand.vmem [shape: f32[64,32], index: 7, kind: input, shape index: {}]
  %s8 = inlined_call_operand.vmem [shape: f32[1,32], index: 8, kind: input, shape index: {}]
  %s9 = inlined_call_operand.vmem [shape: f32[1,32], index: 9, kind: input, shape index: {}]
  %s10 = inlined_call_operand.vmem [shape: f32[1,32], index: 10, kind: input, shape index: {}]
  %s11 = inlined_call_operand.hbm [shape: f32[16,32], index: 11, kind: output, shape index: {}]
  %s12 = sld [smem:[#allocation0]]
  $region58: #{tpu_custom_call.1} parent=0
    _
  %s14 = ssub.s32 1, %s12
  %s15 = scalar_select 0, %s14, %s12
  $region1: #{tpu_custom_call.1} parent=0
    #allocation2 [shape = 'u8[8192]{0}', space=vmem, size = 0x2000, scoped, tag = 'input window, operand 0, single buffered']
    #allocation3 [shape = 's32[1]{0}', space=sflag, size = 0x4, scoped, tag = 'scoped memory for tpu_custom_call.1']
    #allocation4 [shape = 's32[1]{0}', space=sflag, size = 0x4, scoped, tag = 'scoped memory for tpu_custom_call.1']
    #allocation5 [shape = 'u8[8192]{0}', space=vmem, size = 0x2000, scoped, tag = 'output window, operand 0, single buffered']
    %16 = vsyncpa [#allocation3], 0
    %17 = vsyncpa [#allocation4], 0
    // Predicated region
    $region2: #{tpu_custom_call.1} parent=1 // pred_check
      _
    $region3: #{tpu_custom_call.1} parent=1 // pred_check_branch
      %19 = sbr.rel (0) target = $region5
    $region4: #{tpu_custom_call.1} parent=1 // pred_region
      %s21 = ssub.s32 256, 256
      %22 = vsyncadd [#allocation3], %s21
      %s23 = sshll.u32 [#allocation2], 4
      %s24 = int_to_ptr.vmem [resolvable:$true] %s23
      %29 = dma.hbm_to_vmem [thread:$0]  %s0, 256, %s24, [#allocation3], 128, 128, 8
    $region5: #{tpu_custom_call.1} parent=1 // pred_fallthru
      _
    // Predicated region
    $region6: #{tpu_custom_call.1} parent=1 // pred_check
      _
    $region7: #{tpu_custom_call.1} parent=1 // pred_check_branch
      %31 = sbr.rel (0) target = $region9
    $region8: #{tpu_custom_call.1} parent=1 // pred_region
      _
    $region9: #{tpu_custom_call.1} parent=1 // pred_fallthru
      _
    // Predicated region
    $region10: #{tpu_custom_call.1} parent=1 // pred_check
      _
    $region11: #{tpu_custom_call.1} parent=1 // pred_check_branch
      %33 = sbr.rel (0) target = $region13
    $region12: #{tpu_custom_call.1} parent=1 // pred_region
      _
    $region13: #{tpu_custom_call.1} parent=1 // pred_fallthru
      _
    // Predicated region
    $region14: #{tpu_custom_call.1} parent=1 // pred_check
      _
    $region15: #{tpu_custom_call.1} parent=1 // pred_check_branch
      %35 = sbr.rel (0) target = $region17
    $region16: #{tpu_custom_call.1} parent=1 // pred_region
      _
    $region17: #{tpu_custom_call.1} parent=1 // pred_fallthru
      _
    // Predicated region
    $region18: #{tpu_custom_call.1} parent=1 // pred_check
      _
    $region19: #{tpu_custom_call.1} parent=1 // pred_check_branch
      %37 = sbr.rel (0) target = $region21
    $region20: #{tpu_custom_call.1} parent=1 // pred_region
      _
    $region21: #{tpu_custom_call.1} parent=1 // pred_fallthru
      _
    // Predicated region
    $region22: #{tpu_custom_call.1} parent=1 // pred_check
      _
    $region23: #{tpu_custom_call.1} parent=1 // pred_check_branch
      %39 = sbr.rel (0) target = $region25
    $region24: #{tpu_custom_call.1} parent=1 // pred_region
      _
    $region25: #{tpu_custom_call.1} parent=1 // pred_fallthru
      _
    // Predicated region
    $region26: #{tpu_custom_call.1} parent=1 // pred_check
      _
    $region27: #{tpu_custom_call.1} parent=1 // pred_check_branch
      %41 = sbr.rel (0) target = $region29
    $region28: #{tpu_custom_call.1} parent=1 // pred_region
      _
    $region29: #{tpu_custom_call.1} parent=1 // pred_fallthru
      _
    // Predicated region
    $region30: #{tpu_custom_call.1} parent=1 // pred_check
      _
    $region31: #{tpu_custom_call.1} parent=1 // pred_check_branch
      %43 = sbr.rel (0) target = $region33
    $region32: #{tpu_custom_call.1} parent=1 // pred_region
      _
    $region33: #{tpu_custom_call.1} parent=1 // pred_fallthru
      _
    // Predicated region
    $region34: #{tpu_custom_call.1} parent=1 // pred_check
      _
    $region35: #{tpu_custom_call.1} parent=1 // pred_check_branch
      %45 = sbr.rel (0) target = $region37
    $region36: #{tpu_custom_call.1} parent=1 // pred_region
      _
    $region37: #{tpu_custom_call.1} parent=1 // pred_fallthru
      _
    // Predicated region
    $region38: #{tpu_custom_call.1} parent=1 // pred_check
      _
    $region39: #{tpu_custom_call.1} parent=1 // pred_check_branch
      %47 = sbr.rel (0) target = $region41
    $region40: #{tpu_custom_call.1} parent=1 // pred_region
      _
    $region41: #{tpu_custom_call.1} parent=1 // pred_fallthru
      _
    // Predicated region
    $region42: #{tpu_custom_call.1} parent=1 // pred_check
      _
    $region43: #{tpu_custom_call.1} parent=1 // pred_check_branch
      %49 = sbr.rel (0) target = $region45
    $region44: #{tpu_custom_call.1} parent=1 // pred_region
      _
    $region45: #{tpu_custom_call.1} parent=1 // pred_fallthru
      _
    // Predicated region
    $region46: #{tpu_custom_call.1} parent=1 // pred_check
      _
    $region47: #{tpu_custom_call.1} parent=1 // pred_check_branch
      %51 = sbr.rel (0) target = $region49
    $region48: #{tpu_custom_call.1} parent=1 // pred_region
      %52 = dma.done [#allocation3], 256
    $region49: #{tpu_custom_call.1} parent=1 // pred_fallthru
      _
    %v53 = vld [vmem:[#allocation2] sm:$0xff]
    %v54 = vld [vmem:[#allocation2 + $0x8] sm:$0xff]
    %v55 = vld [vmem:[%s1] sm:$0xff]
    %v56 = vld [vmem:[%s1 + $0x8] sm:$0xff]
    %v57 = vld [vmem:[%s1 + $0x10] sm:$0xff]
    %v58 = vld [vmem:[%s1 + $0x18] sm:$0xff]
    %vm59 = vcmask 261120
    %v61 = vsel %vm59, %v53, 0
    %v64 = vsel %vm59, %v54, 0
    %66 = vmatprep.subr.mxu0 0.0
    %67 = vmatpush1.msra.mxu0 0.0
    %68 = vmatprep.subr.mxu0 0.0
    %69 = vmatpush1.msra.mxu0 0.0
    %70 = vmatprep.subr.mxu0 0.0
    %71 = vmatpush1.msra.mxu0 0.0
    %72 = vmatprep.subr.mxu0 0.0
    %73 = vmatpush1.msra.mxu0 0.0
    %74 = vmatprep.subr.mxu0 0.0
    %75 = vmatpush1.msra.mxu0 0.0
    %76 = vmatprep.subr.mxu0 0.0
    %77 = vmatpush1.msra.mxu0 0.0
    %78 = vmatprep.subr.mxu0 0.0
    %79 = vmatpush1.msra.mxu0 0.0
    %80 = vmatprep.subr.mxu0 0.0
    %81 = vmatpush1.msra.mxu0 0.0
    %82 = vmatprep.subr.mxu0 0.0
    %83 = vmatpush1.msra.mxu0 0.0
    %84 = vmatprep.subr.mxu0 0.0
    %85 = vmatpush1.msra.mxu0 0.0
    %86 = vmatprep.subr.mxu0 0.0
    %87 = vmatpush1.msra.mxu0 0.0
    %88 = vmatprep.subr.mxu0 0.0
    %89 = vmatpush1.msra.mxu0 0.0
    %90 = vmatprep.subr.mxu0 0.0
    %91 = vmatpush1.msra.mxu0 %v58
    %92 = vmatprep.subr.mxu0 0.0
    %93 = vmatpush1.msra.mxu0 %v57
    %94 = vmatprep.subr.mxu0 0.0
    %95 = vmatpush1.msra.mxu0 %v56
    %96 = vmatprep.subr.mxu0 0.0
    %97 = vmatpush1.msra.mxu0 %v55
    %98 = vmatprep.subr.mxu0 0.0
    %99 = vmatpush2.msra.mxu0 0.0
    %100 = vmatprep.subr.mxu0 0.0
    %101 = vmatpush2.msra.mxu0 0.0
    %102 = vmatprep.subr.mxu0 0.0
    %103 = vmatpush2.msra.mxu0 0.0
    %104 = vmatprep.subr.mxu0 0.0
    %105 = vmatpush2.msra.mxu0 0.0
    %106 = vmatprep.subr.mxu0 0.0
    %107 = vmatpush2.msra.mxu0 0.0
    %108 = vmatprep.subr.mxu0 0.0
    %109 = vmatpush2.msra.mxu0 0.0
    %110 = vmatprep.subr.mxu0 0.0
    %111 = vmatpush2.msra.mxu0 0.0
    %112 = vmatprep.subr.mxu0 0.0
    %113 = vmatpush2.msra.mxu0 0.0
    %114 = vmatprep.subr.mxu0 0.0
    %115 = vmatpush2.msra.mxu0 0.0
    %116 = vmatprep.subr.mxu0 0.0
    %117 = vmatpush2.msra.mxu0 0.0
    %118 = vmatprep.subr.mxu0 0.0
    %119 = vmatpush2.msra.mxu0 0.0
    %120 = vmatprep.subr.mxu0 0.0
    %121 = vmatpush2.msra.mxu0 0.0
    %122 = vmatprep.subr.mxu0 0.0
    %123 = vmatpush2.msra.mxu0 0.0
    %124 = vmatprep.subr.mxu0 0.0
    %125 = vmatpush2.msra.mxu0 0.0
    %126 = vmatprep.subr.mxu0 0.0
    %127 = vmatpush2.msra.mxu0 0.0
    %128 = vmatprep.subr.mxu0 0.0
    %129 = vmatpush2.msra.mxu0 0.0
    %130 = vmatprep.mubr.f32.mxu0 0.0
    %131 = vmatmul.mubr.f32.gmra.mxu0 %v61
    %v132 = vpop.f32.mrf.mxu0
    %v133 = vadd.f32 0.0, %v132
    %v134 = vpop.f32.mrf.mxu0
    %135 = vmatprep.mubr.f32.mxu0 0.0
    %136 = vmatmul.mubr.f32.gmra.mxu0 %v64
    %v137 = vpop.f32.mrf.mxu0
    %v138 = vadd.f32 0.0, %v137
    %v139 = vpop.f32.mrf.mxu0
    %140 = vdwg.mxu0
    %142 = vrot.lane.b32.xlu0 %v133, 96
    %v143 = vpop.permute.xlu0 %142
    %vm144 = vcmask 64512
    %v145 = vsel %vm144, %v133, 0
    %v147 = vsel %vm144, %v143, 0
    %149 = vmatprep.subr.mxu0 0.0
    %150 = vmatpush1.xpose.msra.mxu0 0.0
    %151 = vmatprep.subr.mxu0 0.0
    %152 = vmatpush1.xpose.msra.mxu0 0.0
    %153 = vmatprep.subr.mxu0 0.0
    %154 = vmatpush1.xpose.msra.mxu0 0.0
    %155 = vmatprep.subr.mxu0 0.0
    %156 = vmatpush1.xpose.msra.mxu0 0.0
    %157 = vmatprep.subr.mxu0 0.0
    %158 = vmatpush1.xpose.msra.mxu0 0.0
    %159 = vmatprep.subr.mxu0 0.0
    %160 = vmatpush1.xpose.msra.mxu0 0.0
    %161 = vmatprep.subr.mxu0 0.0
    %162 = vmatpush1.xpose.msra.mxu0 0.0
    %163 = vmatprep.subr.mxu0 0.0
    %164 = vmatpush1.xpose.msra.mxu0 0.0
    %165 = vmatprep.subr.mxu0 0.0
    %166 = vmatpush1.xpose.msra.mxu0 0.0
    %167 = vmatprep.subr.mxu0 0.0
    %168 = vmatpush1.xpose.msra.mxu0 0.0
    %169 = vmatprep.subr.mxu0 0.0
    %170 = vmatpush1.xpose.msra.mxu0 0.0
    %171 = vmatprep.subr.mxu0 0.0
    %172 = vmatpush1.xpose.msra.mxu0 0.0
    %173 = vmatprep.subr.mxu0 0.0
    %174 = vmatpush1.xpose.msra.mxu0 0.0
    %175 = vmatprep.subr.mxu0 0.0
    %176 = vmatpush1.xpose.msra.mxu0 0.0
    %177 = vmatprep.subr.mxu0 0.0
    %178 = vmatpush1.xpose.msra.mxu0 0.0
    %179 = vmatprep.subr.mxu0 0.0
    %180 = vmatpush1.xpose.msra.mxu0 %v147
    %181 = vmatprep.subr.mxu0 0.0
    %182 = vmatpush2.xpose.msra.mxu0 0.0
    %183 = vmatprep.subr.mxu0 0.0
    %184 = vmatpush2.xpose.msra.mxu0 0.0
    %185 = vmatprep.subr.mxu0 0.0
    %186 = vmatpush2.xpose.msra.mxu0 0.0
    %187 = vmatprep.subr.mxu0 0.0
    %188 = vmatpush2.xpose.msra.mxu0 0.0
    %189 = vmatprep.subr.mxu0 0.0
    %190 = vmatpush2.xpose.msra.mxu0 0.0
    %191 = vmatprep.subr.mxu0 0.0
    %192 = vmatpush2.xpose.msra.mxu0 0.0
    %193 = vmatprep.subr.mxu0 0.0
    %194 = vmatpush2.xpose.msra.mxu0 0.0
    %195 = vmatprep.subr.mxu0 0.0
    %196 = vmatpush2.xpose.msra.mxu0 0.0
    %197 = vmatprep.subr.mxu0 0.0
    %198 = vmatpush2.xpose.msra.mxu0 0.0
    %199 = vmatprep.subr.mxu0 0.0
    %200 = vmatpush2.xpose.msra.mxu0 0.0
    %201 = vmatprep.subr.mxu0 0.0
    %202 = vmatpush2.xpose.msra.mxu0 0.0
    %203 = vmatprep.subr.mxu0 0.0
    %204 = vmatpush2.xpose.msra.mxu0 0.0
    %205 = vmatprep.subr.mxu0 0.0
    %206 = vmatpush2.xpose.msra.mxu0 0.0
    %207 = vmatprep.subr.mxu0 0.0
    %208 = vmatpush2.xpose.msra.mxu0 0.0
    %209 = vmatprep.subr.mxu0 0.0
    %210 = vmatpush2.xpose.msra.mxu0 0.0
    %211 = vmatprep.subr.mxu0 0.0
    %212 = vmatpush2.xpose.msra.mxu0 0.0
    %213 = vmatprep.mubr.f32.mxu0 0.0
    %214 = vmatmul.mubr.f32.gmra.mxu0 %v145
    %v215 = vpop.f32.mrf.mxu0
    %v216 = vadd.f32 0.0, %v215
    %v217 = vpop.f32.mrf.mxu0
    %218 = vdwg.mxu0
    %v219 = vmul.f32 %v216, 0.35355338
    %v220 = vsel %vm144, %v219, -inf
    %221 = vmax.xlane.f32.xlu0 %v220
    %v222 = vpop.xlane.xlu0 %221
    %v223 = vsub.f32 %v219, %v222
    %v224 = vmul.f32 %v223, 1.442695
    %v225 = vpow.pop %v224
    %v226 = vsel %vm144, %v225, 0.0
    %227 = vadd.xlane.f32.xlu0 %v226
    %v228 = vpop.xlane.xlu0 %227
    %v229 = vrcp.pop %v228
    %v230 = vmul.f32 %v225, %v229
    %231 = vrot.lane.b32.xlu0 %v133, 64
    %v232 = vpop.permute.xlu0 %231
    %v235 = vsel %vm144, %v230, 0
    %237 = vmatprep.subr.mxu0 0.0
    %238 = vmatpush1.msra.mxu0 0.0
    %239 = vmatprep.subr.mxu0 0.0
    %240 = vmatpush1.msra.mxu0 0.0
    %241 = vmatprep.subr.mxu0 0.0
    %242 = vmatpush1.msra.mxu0 0.0
    %243 = vmatprep.subr.mxu0 0.0
    %244 = vmatpush1.msra.mxu0 0.0
    %245 = vmatprep.subr.mxu0 0.0
    %246 = vmatpush1.msra.mxu0 0.0
    %247 = vmatprep.subr.mxu0 0.0
    %248 = vmatpush1.msra.mxu0 0.0
    %249 = vmatprep.subr.mxu0 0.0
    %250 = vmatpush1.msra.mxu0 0.0
    %251 = vmatprep.subr.mxu0 0.0
    %252 = vmatpush1.msra.mxu0 0.0
    %253 = vmatprep.subr.mxu0 0.0
    %254 = vmatpush1.msra.mxu0 0.0
    %255 = vmatprep.subr.mxu0 0.0
    %256 = vmatpush1.msra.mxu0 0.0
    %257 = vmatprep.subr.mxu0 0.0
    %258 = vmatpush1.msra.mxu0 0.0
    %259 = vmatprep.subr.mxu0 0.0
    %260 = vmatpush1.msra.mxu0 0.0
    %261 = vmatprep.subr.mxu0 0.0
    %262 = vmatpush1.msra.mxu0 0.0
    %263 = vmatprep.subr.mxu0 0.0
    %264 = vmatpush1.msra.mxu0 0.0
    %265 = vmatprep.subr.mxu0 0.0
    %266 = vmatpush1.msra.mxu0 0.0
    %267 = vmatprep.subr.mxu0 0.0
    %268 = vmatpush1.msra.mxu0 %v232
    %269 = vmatprep.subr.mxu0 0.0
    %270 = vmatpush2.msra.mxu0 0.0
    %271 = vmatprep.subr.mxu0 0.0
    %272 = vmatpush2.msra.mxu0 0.0
    %273 = vmatprep.subr.mxu0 0.0
    %274 = vmatpush2.msra.mxu0 0.0
    %275 = vmatprep.subr.mxu0 0.0
    %276 = vmatpush2.msra.mxu0 0.0
    %277 = vmatprep.subr.mxu0 0.0
    %278 = vmatpush2.msra.mxu0 0.0
    %279 = vmatprep.subr.mxu0 0.0
    %280 = vmatpush2.msra.mxu0 0.0
    %281 = vmatprep.subr.mxu0 0.0
    %282 = vmatpush2.msra.mxu0 0.0
    %283 = vmatprep.subr.mxu0 0.0
    %284 = vmatpush2.msra.mxu0 0.0
    %285 = vmatprep.subr.mxu0 0.0
    %286 = vmatpush2.msra.mxu0 0.0
    %287 = vmatprep.subr.mxu0 0.0
    %288 = vmatpush2.msra.mxu0 0.0
    %289 = vmatprep.subr.mxu0 0.0
    %290 = vmatpush2.msra.mxu0 0.0
    %291 = vmatprep.subr.mxu0 0.0
    %292 = vmatpush2.msra.mxu0 0.0
    %293 = vmatprep.subr.mxu0 0.0
    %294 = vmatpush2.msra.mxu0 0.0
    %295 = vmatprep.subr.mxu0 0.0
    %296 = vmatpush2.msra.mxu0 0.0
    %297 = vmatprep.subr.mxu0 0.0
    %298 = vmatpush2.msra.mxu0 0.0
    %299 = vmatprep.subr.mxu0 0.0
    %300 = vmatpush2.msra.mxu0 0.0
    %301 = vmatprep.mubr.f32.mxu0 0.0
    %302 = vmatmul.mubr.f32.gmra.mxu0 %v235
    %v303 = vpop.f32.mrf.mxu0
    %v304 = vadd.f32 0.0, %v303
    %v305 = vpop.f32.mrf.mxu0
    %306 = vdwg.mxu0
    %307 = vrot.lane.b32.xlu0 %v133, 120
    %v308 = vpop.permute.xlu0 %307
    %309 = vrot.lane.b32.xlu0 %v133, 88
    %v310 = vpop.permute.xlu0 %309
    %v311 = vsel %vm144, %v308, 0
    %v313 = vsel %vm144, %v310, 0
    %315 = vmatprep.subr.mxu0 0.0
    %316 = vmatpush1.xpose.msra.mxu0 0.0
    %317 = vmatprep.subr.mxu0 0.0
    %318 = vmatpush1.xpose.msra.mxu0 0.0
    %319 = vmatprep.subr.mxu0 0.0
    %320 = vmatpush1.xpose.msra.mxu0 0.0
    %321 = vmatprep.subr.mxu0 0.0
    %322 = vmatpush1.xpose.msra.mxu0 0.0
    %323 = vmatprep.subr.mxu0 0.0
    %324 = vmatpush1.xpose.msra.mxu0 0.0
    %325 = vmatprep.subr.mxu0 0.0
    %326 = vmatpush1.xpose.msra.mxu0 0.0
    %327 = vmatprep.subr.mxu0 0.0
    %328 = vmatpush1.xpose.msra.mxu0 0.0
    %329 = vmatprep.subr.mxu0 0.0
    %330 = vmatpush1.xpose.msra.mxu0 0.0
    %331 = vmatprep.subr.mxu0 0.0
    %332 = vmatpush1.xpose.msra.mxu0 0.0
    %333 = vmatprep.subr.mxu0 0.0
    %334 = vmatpush1.xpose.msra.mxu0 0.0
    %335 = vmatprep.subr.mxu0 0.0
    %336 = vmatpush1.xpose.msra.mxu0 0.0
    %337 = vmatprep.subr.mxu0 0.0
    %338 = vmatpush1.xpose.msra.mxu0 0.0
    %339 = vmatprep.subr.mxu0 0.0
    %340 = vmatpush1.xpose.msra.mxu0 0.0
    %341 = vmatprep.subr.mxu0 0.0
    %342 = vmatpush1.xpose.msra.mxu0 0.0
    %343 = vmatprep.subr.mxu0 0.0
    %344 = vmatpush1.xpose.msra.mxu0 0.0
    %345 = vmatprep.subr.mxu0 0.0
    %346 = vmatpush1.xpose.msra.mxu0 %v313
    %347 = vmatprep.subr.mxu0 0.0
    %348 = vmatpush2.xpose.msra.mxu0 0.0
    %349 = vmatprep.subr.mxu0 0.0
    %350 = vmatpush2.xpose.msra.mxu0 0.0
    %351 = vmatprep.subr.mxu0 0.0
    %352 = vmatpush2.xpose.msra.mxu0 0.0
    %353 = vmatprep.subr.mxu0 0.0
    %354 = vmatpush2.xpose.msra.mxu0 0.0
    %355 = vmatprep.subr.mxu0 0.0
    %356 = vmatpush2.xpose.msra.mxu0 0.0
    %357 = vmatprep.subr.mxu0 0.0
    %358 = vmatpush2.xpose.msra.mxu0 0.0
    %359 = vmatprep.subr.mxu0 0.0
    %360 = vmatpush2.xpose.msra.mxu0 0.0
    %361 = vmatprep.subr.mxu0 0.0
    %362 = vmatpush2.xpose.msra.mxu0 0.0
    %363 = vmatprep.subr.mxu0 0.0
    %364 = vmatpush2.xpose.msra.mxu0 0.0
    %365 = vmatprep.subr.mxu0 0.0
    %366 = vmatpush2.xpose.msra.mxu0 0.0
    %367 = vmatprep.subr.mxu0 0.0
    %368 = vmatpush2.xpose.msra.mxu0 0.0
    %369 = vmatprep.subr.mxu0 0.0
    %370 = vmatpush2.xpose.msra.mxu0 0.0
    %371 = vmatprep.subr.mxu0 0.0
    %372 = vmatpush2.xpose.msra.mxu0 0.0
    %373 = vmatprep.subr.mxu0 0.0
    %374 = vmatpush2.xpose.msra.mxu0 0.0
    %375 = vmatprep.subr.mxu0 0.0
    %376 = vmatpush2.xpose.msra.mxu0 0.0
    %377 = vmatprep.subr.mxu0 0.0
    %378 = vmatpush2.xpose.msra.mxu0 0.0
    %379 = vmatprep.mubr.f32.mxu0 0.0
    %380 = vmatmul.mubr.f32.gmra.mxu0 %v311
    %v381 = vpop.f32.mrf.mxu0
    %v382 = vadd.f32 0.0, %v381
    %v383 = vpop.f32.mrf.mxu0
    %384 = vdwg.mxu0
    %v385 = vmul.f32 %v382, 0.35355338
    %v386 = vsel %vm144, %v385, -inf
    %387 = vmax.xlane.f32.xlu0 %v386
    %v388 = vpop.xlane.xlu0 %387
    %v389 = vsub.f32 %v385, %v388
    %v390 = vmul.f32 %v389, 1.442695
    %v391 = vpow.pop %v390
    %v392 = vsel %vm144, %v391, 0.0
    %393 = vadd.xlane.f32.xlu0 %v392
    %v394 = vpop.xlane.xlu0 %393
    %v395 = vrcp.pop %v394
    %v396 = vmul.f32 %v391, %v395
    %397 = vrot.lane.b32.xlu0 %v133, 56
    %v398 = vpop.permute.xlu0 %397
    %v401 = vsel %vm144, %v396, 0
    %403 = vmatprep.subr.mxu0 0.0
    %404 = vmatpush1.msra.mxu0 0.0
    %405 = vmatprep.subr.mxu0 0.0
    %406 = vmatpush1.msra.mxu0 0.0
    %407 = vmatprep.subr.mxu0 0.0
    %408 = vmatpush1.msra.mxu0 0.0
    %409 = vmatprep.subr.mxu0 0.0
    %410 = vmatpush1.msra.mxu0 0.0
    %411 = vmatprep.subr.mxu0 0.0
    %412 = vmatpush1.msra.mxu0 0.0
    %413 = vmatprep.subr.mxu0 0.0
    %414 = vmatpush1.msra.mxu0 0.0
    %415 = vmatprep.subr.mxu0 0.0
    %416 = vmatpush1.msra.mxu0 0.0
    %417 = vmatprep.subr.mxu0 0.0
    %418 = vmatpush1.msra.mxu0 0.0
    %419 = vmatprep.subr.mxu0 0.0
    %420 = vmatpush1.msra.mxu0 0.0
    %421 = vmatprep.subr.mxu0 0.0
    %422 = vmatpush1.msra.mxu0 0.0
    %423 = vmatprep.subr.mxu0 0.0
    %424 = vmatpush1.msra.mxu0 0.0
    %425 = vmatprep.subr.mxu0 0.0
    %426 = vmatpush1.msra.mxu0 0.0
    %427 = vmatprep.subr.mxu0 0.0
    %428 = vmatpush1.msra.mxu0 0.0
    %429 = vmatprep.subr.mxu0 0.0
    %430 = vmatpush1.msra.mxu0 0.0
    %431 = vmatprep.subr.mxu0 0.0
    %432 = vmatpush1.msra.mxu0 0.0
    %433 = vmatprep.subr.mxu0 0.0
    %434 = vmatpush1.msra.mxu0 %v398
    %435 = vmatprep.subr.mxu0 0.0
    %436 = vmatpush2.msra.mxu0 0.0
    %437 = vmatprep.subr.mxu0 0.0
    %438 = vmatpush2.msra.mxu0 0.0
    %439 = vmatprep.subr.mxu0 0.0
    %440 = vmatpush2.msra.mxu0 0.0
    %441 = vmatprep.subr.mxu0 0.0
    %442 = vmatpush2.msra.mxu0 0.0
    %443 = vmatprep.subr.mxu0 0.0
    %444 = vmatpush2.msra.mxu0 0.0
    %445 = vmatprep.subr.mxu0 0.0
    %446 = vmatpush2.msra.mxu0 0.0
    %447 = vmatprep.subr.mxu0 0.0
    %448 = vmatpush2.msra.mxu0 0.0
    %449 = vmatprep.subr.mxu0 0.0
    %450 = vmatpush2.msra.mxu0 0.0
    %451 = vmatprep.subr.mxu0 0.0
    %452 = vmatpush2.msra.mxu0 0.0
    %453 = vmatprep.subr.mxu0 0.0
    %454 = vmatpush2.msra.mxu0 0.0
    %455 = vmatprep.subr.mxu0 0.0
    %456 = vmatpush2.msra.mxu0 0.0
    %457 = vmatprep.subr.mxu0 0.0
    %458 = vmatpush2.msra.mxu0 0.0
    %459 = vmatprep.subr.mxu0 0.0
    %460 = vmatpush2.msra.mxu0 0.0
    %461 = vmatprep.subr.mxu0 0.0
    %462 = vmatpush2.msra.mxu0 0.0
    %463 = vmatprep.subr.mxu0 0.0
    %464 = vmatpush2.msra.mxu0 0.0
    %465 = vmatprep.subr.mxu0 0.0
    %466 = vmatpush2.msra.mxu0 0.0
    %467 = vmatprep.mubr.f32.mxu0 0.0
    %468 = vmatmul.mubr.f32.gmra.mxu0 %v401
    %v469 = vpop.f32.mrf.mxu0
    %v470 = vadd.f32 0.0, %v469
    %v471 = vpop.f32.mrf.mxu0
    %472 = vdwg.mxu0
    %473 = vrot.lane.b32.xlu0 %v133, 112
    %v474 = vpop.permute.xlu0 %473
    %475 = vrot.lane.b32.xlu0 %v133, 80
    %v476 = vpop.permute.xlu0 %475
    %v477 = vsel %vm144, %v474, 0
    %v479 = vsel %vm144, %v476, 0
    %481 = vmatprep.subr.mxu0 0.0
    %482 = vmatpush1.xpose.msra.mxu0 0.0
    %483 = vmatprep.subr.mxu0 0.0
    %484 = vmatpush1.xpose.msra.mxu0 0.0
    %485 = vmatprep.subr.mxu0 0.0
    %486 = vmatpush1.xpose.msra.mxu0 0.0
    %487 = vmatprep.subr.mxu0 0.0
    %488 = vmatpush1.xpose.msra.mxu0 0.0
    %489 = vmatprep.subr.mxu0 0.0
    %490 = vmatpush1.xpose.msra.mxu0 0.0
    %491 = vmatprep.subr.mxu0 0.0
    %492 = vmatpush1.xpose.msra.mxu0 0.0
    %493 = vmatprep.subr.mxu0 0.0
    %494 = vmatpush1.xpose.msra.mxu0 0.0
    %495 = vmatprep.subr.mxu0 0.0
    %496 = vmatpush1.xpose.msra.mxu0 0.0
    %497 = vmatprep.subr.mxu0 0.0
    %498 = vmatpush1.xpose.msra.mxu0 0.0
    %499 = vmatprep.subr.mxu0 0.0
    %500 = vmatpush1.xpose.msra.mxu0 0.0
    %501 = vmatprep.subr.mxu0 0.0
    %502 = vmatpush1.xpose.msra.mxu0 0.0
    %503 = vmatprep.subr.mxu0 0.0
    %504 = vmatpush1.xpose.msra.mxu0 0.0
    %505 = vmatprep.subr.mxu0 0.0
    %506 = vmatpush1.xpose.msra.mxu0 0.0
    %507 = vmatprep.subr.mxu0 0.0
    %508 = vmatpush1.xpose.msra.mxu0 0.0
    %509 = vmatprep.subr.mxu0 0.0
    %510 = vmatpush1.xpose.msra.mxu0 0.0
    %511 = vmatprep.subr.mxu0 0.0
    %512 = vmatpush1.xpose.msra.mxu0 %v479
    %513 = vmatprep.subr.mxu0 0.0
    %514 = vmatpush2.xpose.msra.mxu0 0.0
    %515 = vmatprep.subr.mxu0 0.0
    %516 = vmatpush2.xpose.msra.mxu0 0.0
    %517 = vmatprep.subr.mxu0 0.0
    %518 = vmatpush2.xpose.msra.mxu0 0.0
    %519 = vmatprep.subr.mxu0 0.0
    %520 = vmatpush2.xpose.msra.mxu0 0.0
    %521 = vmatprep.subr.mxu0 0.0
    %522 = vmatpush2.xpose.msra.mxu0 0.0
    %523 = vmatprep.subr.mxu0 0.0
    %524 = vmatpush2.xpose.msra.mxu0 0.0
    %525 = vmatprep.subr.mxu0 0.0
    %526 = vmatpush2.xpose.msra.mxu0 0.0
    %527 = vmatprep.subr.mxu0 0.0
    %528 = vmatpush2.xpose.msra.mxu0 0.0
    %529 = vmatprep.subr.mxu0 0.0
    %530 = vmatpush2.xpose.msra.mxu0 0.0
    %531 = vmatprep.subr.mxu0 0.0
    %532 = vmatpush2.xpose.msra.mxu0 0.0
    %533 = vmatprep.subr.mxu0 0.0
    %534 = vmatpush2.xpose.msra.mxu0 0.0
    %535 = vmatprep.subr.mxu0 0.0
    %536 = vmatpush2.xpose.msra.mxu0 0.0
    %537 = vmatprep.subr.mxu0 0.0
    %538 = vmatpush2.xpose.msra.mxu0 0.0
    %539 = vmatprep.subr.mxu0 0.0
    %540 = vmatpush2.xpose.msra.mxu0 0.0
    %541 = vmatprep.subr.mxu0 0.0
    %542 = vmatpush2.xpose.msra.mxu0 0.0
    %543 = vmatprep.subr.mxu0 0.0
    %544 = vmatpush2.xpose.msra.mxu0 0.0
    %545 = vmatprep.mubr.f32.mxu0 0.0
    %546 = vmatmul.mubr.f32.gmra.mxu0 %v477
    %v547 = vpop.f32.mrf.mxu0
    %v548 = vadd.f32 0.0, %v547
    %v549 = vpop.f32.mrf.mxu0
    %550 = vdwg.mxu0
    %v551 = vmul.f32 %v548, 0.35355338
    %v552 = vsel %vm144, %v551, -inf
    %553 = vmax.xlane.f32.xlu0 %v552
    %v554 = vpop.xlane.xlu0 %553
    %v555 = vsub.f32 %v551, %v554
    %v556 = vmul.f32 %v555, 1.442695
    %v557 = vpow.pop %v556
    %v558 = vsel %vm144, %v557, 0.0
    %559 = vadd.xlane.f32.xlu0 %v558
    %v560 = vpop.xlane.xlu0 %559
    %v561 = vrcp.pop %v560
    %v562 = vmul.f32 %v557, %v561
    %563 = vrot.lane.b32.xlu0 %v133, 48
    %v564 = vpop.permute.xlu0 %563
    %v567 = vsel %vm144, %v562, 0
    %569 = vmatprep.subr.mxu0 0.0
    %570 = vmatpush1.msra.mxu0 0.0
    %571 = vmatprep.subr.mxu0 0.0
    %572 = vmatpush1.msra.mxu0 0.0
    %573 = vmatprep.subr.mxu0 0.0
    %574 = vmatpush1.msra.mxu0 0.0
    %575 = vmatprep.subr.mxu0 0.0
    %576 = vmatpush1.msra.mxu0 0.0
    %577 = vmatprep.subr.mxu0 0.0
    %578 = vmatpush1.msra.mxu0 0.0
    %579 = vmatprep.subr.mxu0 0.0
    %580 = vmatpush1.msra.mxu0 0.0
    %581 = vmatprep.subr.mxu0 0.0
    %582 = vmatpush1.msra.mxu0 0.0
    %583 = vmatprep.subr.mxu0 0.0
    %584 = vmatpush1.msra.mxu0 0.0
    %585 = vmatprep.subr.mxu0 0.0
    %586 = vmatpush1.msra.mxu0 0.0
    %587 = vmatprep.subr.mxu0 0.0
    %588 = vmatpush1.msra.mxu0 0.0
    %589 = vmatprep.subr.mxu0 0.0
    %590 = vmatpush1.msra.mxu0 0.0
    %591 = vmatprep.subr.mxu0 0.0
    %592 = vmatpush1.msra.mxu0 0.0
    %593 = vmatprep.subr.mxu0 0.0
    %594 = vmatpush1.msra.mxu0 0.0
    %595 = vmatprep.subr.mxu0 0.0
    %596 = vmatpush1.msra.mxu0 0.0
    %597 = vmatprep.subr.mxu0 0.0
    %598 = vmatpush1.msra.mxu0 0.0
    %599 = vmatprep.subr.mxu0 0.0
    %600 = vmatpush1.msra.mxu0 %v564
    %601 = vmatprep.subr.mxu0 0.0
    %602 = vmatpush2.msra.mxu0 0.0
    %603 = vmatprep.subr.mxu0 0.0
    %604 = vmatpush2.msra.mxu0 0.0
    %605 = vmatprep.subr.mxu0 0.0
    %606 = vmatpush2.msra.mxu0 0.0
    %607 = vmatprep.subr.mxu0 0.0
    %608 = vmatpush2.msra.mxu0 0.0
    %609 = vmatprep.subr.mxu0 0.0
    %610 = vmatpush2.msra.mxu0 0.0
    %611 = vmatprep.subr.mxu0 0.0
    %612 = vmatpush2.msra.mxu0 0.0
    %613 = vmatprep.subr.mxu0 0.0
    %614 = vmatpush2.msra.mxu0 0.0
    %615 = vmatprep.subr.mxu0 0.0
    %616 = vmatpush2.msra.mxu0 0.0
    %617 = vmatprep.subr.mxu0 0.0
    %618 = vmatpush2.msra.mxu0 0.0
    %619 = vmatprep.subr.mxu0 0.0
    %620 = vmatpush2.msra.mxu0 0.0
    %621 = vmatprep.subr.mxu0 0.0
    %622 = vmatpush2.msra.mxu0 0.0
    %623 = vmatprep.subr.mxu0 0.0
    %624 = vmatpush2.msra.mxu0 0.0
    %625 = vmatprep.subr.mxu0 0.0
    %626 = vmatpush2.msra.mxu0 0.0
    %627 = vmatprep.subr.mxu0 0.0
    %628 = vmatpush2.msra.mxu0 0.0
    %629 = vmatprep.subr.mxu0 0.0
    %630 = vmatpush2.msra.mxu0 0.0
    %631 = vmatprep.subr.mxu0 0.0
    %632 = vmatpush2.msra.mxu0 0.0
    %633 = vmatprep.mubr.f32.mxu0 0.0
    %634 = vmatmul.mubr.f32.gmra.mxu0 %v567
    %v635 = vpop.f32.mrf.mxu0
    %v636 = vadd.f32 0.0, %v635
    %v637 = vpop.f32.mrf.mxu0
    %638 = vdwg.mxu0
    %639 = vrot.lane.b32.xlu0 %v133, 104
    %v640 = vpop.permute.xlu0 %639
    %641 = vrot.lane.b32.xlu0 %v133, 72
    %v642 = vpop.permute.xlu0 %641
    %v643 = vsel %vm144, %v640, 0
    %v645 = vsel %vm144, %v642, 0
    %647 = vmatprep.subr.mxu0 0.0
    %648 = vmatpush1.xpose.msra.mxu0 0.0
    %649 = vmatprep.subr.mxu0 0.0
    %650 = vmatpush1.xpose.msra.mxu0 0.0
    %651 = vmatprep.subr.mxu0 0.0
    %652 = vmatpush1.xpose.msra.mxu0 0.0
    %653 = vmatprep.subr.mxu0 0.0
    %654 = vmatpush1.xpose.msra.mxu0 0.0
    %655 = vmatprep.subr.mxu0 0.0
    %656 = vmatpush1.xpose.msra.mxu0 0.0
    %657 = vmatprep.subr.mxu0 0.0
    %658 = vmatpush1.xpose.msra.mxu0 0.0
    %659 = vmatprep.subr.mxu0 0.0
    %660 = vmatpush1.xpose.msra.mxu0 0.0
    %661 = vmatprep.subr.mxu0 0.0
    %662 = vmatpush1.xpose.msra.mxu0 0.0
    %663 = vmatprep.subr.mxu0 0.0
    %664 = vmatpush1.xpose.msra.mxu0 0.0
    %665 = vmatprep.subr.mxu0 0.0
    %666 = vmatpush1.xpose.msra.mxu0 0.0
    %667 = vmatprep.subr.mxu0 0.0
    %668 = vmatpush1.xpose.msra.mxu0 0.0
    %669 = vmatprep.subr.mxu0 0.0
    %670 = vmatpush1.xpose.msra.mxu0 0.0
    %671 = vmatprep.subr.mxu0 0.0
    %672 = vmatpush1.xpose.msra.mxu0 0.0
    %673 = vmatprep.subr.mxu0 0.0
    %674 = vmatpush1.xpose.msra.mxu0 0.0
    %675 = vmatprep.subr.mxu0 0.0
    %676 = vmatpush1.xpose.msra.mxu0 0.0
    %677 = vmatprep.subr.mxu0 0.0
    %678 = vmatpush1.xpose.msra.mxu0 %v645
    %679 = vmatprep.subr.mxu0 0.0
    %680 = vmatpush2.xpose.msra.mxu0 0.0
    %681 = vmatprep.subr.mxu0 0.0
    %682 = vmatpush2.xpose.msra.mxu0 0.0
    %683 = vmatprep.subr.mxu0 0.0
    %684 = vmatpush2.xpose.msra.mxu0 0.0
    %685 = vmatprep.subr.mxu0 0.0
    %686 = vmatpush2.xpose.msra.mxu0 0.0
    %687 = vmatprep.subr.mxu0 0.0
    %688 = vmatpush2.xpose.msra.mxu0 0.0
    %689 = vmatprep.subr.mxu0 0.0
    %690 = vmatpush2.xpose.msra.mxu0 0.0
    %691 = vmatprep.subr.mxu0 0.0
    %692 = vmatpush2.xpose.msra.mxu0 0.0
    %693 = vmatprep.subr.mxu0 0.0
    %694 = vmatpush2.xpose.msra.mxu0 0.0
    %695 = vmatprep.subr.mxu0 0.0
    %696 = vmatpush2.xpose.msra.mxu0 0.0
    %697 = vmatprep.subr.mxu0 0.0
    %698 = vmatpush2.xpose.msra.mxu0 0.0
    %699 = vmatprep.subr.mxu0 0.0
    %700 = vmatpush2.xpose.msra.mxu0 0.0
    %701 = vmatprep.subr.mxu0 0.0
    %702 = vmatpush2.xpose.msra.mxu0 0.0
    %703 = vmatprep.subr.mxu0 0.0
    %704 = vmatpush2.xpose.msra.mxu0 0.0
    %705 = vmatprep.subr.mxu0 0.0
    %706 = vmatpush2.xpose.msra.mxu0 0.0
    %707 = vmatprep.subr.mxu0 0.0
    %708 = vmatpush2.xpose.msra.mxu0 0.0
    %709 = vmatprep.subr.mxu0 0.0
    %710 = vmatpush2.xpose.msra.mxu0 0.0
    %711 = vmatprep.mubr.f32.mxu0 0.0
    %712 = vmatmul.mubr.f32.gmra.mxu0 %v643
    %v713 = vpop.f32.mrf.mxu0
    %v714 = vadd.f32 0.0, %v713
    %v715 = vpop.f32.mrf.mxu0
    %716 = vdwg.mxu0
    %v717 = vmul.f32 %v714, 0.35355338
    %v718 = vsel %vm144, %v717, -inf
    %719 = vmax.xlane.f32.xlu0 %v718
    %v720 = vpop.xlane.xlu0 %719
    %v721 = vsub.f32 %v717, %v720
    %v722 = vmul.f32 %v721, 1.442695
    %v723 = vpow.pop %v722
    %v724 = vsel %vm144, %v723, 0.0
    %725 = vadd.xlane.f32.xlu0 %v724
    %v726 = vpop.xlane.xlu0 %725
    %v727 = vrcp.pop %v726
    %v728 = vmul.f32 %v723, %v727
    %729 = vrot.lane.b32.xlu0 %v133, 40
    %v730 = vpop.permute.xlu0 %729
    %v733 = vsel %vm144, %v728, 0
    %735 = vmatprep.subr.mxu0 0.0
    %736 = vmatpush1.msra.mxu0 0.0
    %737 = vmatprep.subr.mxu0 0.0
    %738 = vmatpush1.msra.mxu0 0.0
    %739 = vmatprep.subr.mxu0 0.0
    %740 = vmatpush1.msra.mxu0 0.0
    %741 = vmatprep.subr.mxu0 0.0
    %742 = vmatpush1.msra.mxu0 0.0
    %743 = vmatprep.subr.mxu0 0.0
    %744 = vmatpush1.msra.mxu0 0.0
    %745 = vmatprep.subr.mxu0 0.0
    %746 = vmatpush1.msra.mxu0 0.0
    %747 = vmatprep.subr.mxu0 0.0
    %748 = vmatpush1.msra.mxu0 0.0
    %749 = vmatprep.subr.mxu0 0.0
    %750 = vmatpush1.msra.mxu0 0.0
    %751 = vmatprep.subr.mxu0 0.0
    %752 = vmatpush1.msra.mxu0 0.0
    %753 = vmatprep.subr.mxu0 0.0
    %754 = vmatpush1.msra.mxu0 0.0
    %755 = vmatprep.subr.mxu0 0.0
    %756 = vmatpush1.msra.mxu0 0.0
    %757 = vmatprep.subr.mxu0 0.0
    %758 = vmatpush1.msra.mxu0 0.0
    %759 = vmatprep.subr.mxu0 0.0
    %760 = vmatpush1.msra.mxu0 0.0
    %761 = vmatprep.subr.mxu0 0.0
    %762 = vmatpush1.msra.mxu0 0.0
    %763 = vmatprep.subr.mxu0 0.0
    %764 = vmatpush1.msra.mxu0 0.0
    %765 = vmatprep.subr.mxu0 0.0
    %766 = vmatpush1.msra.mxu0 %v730
    %767 = vmatprep.subr.mxu0 0.0
    %768 = vmatpush2.msra.mxu0 0.0
    %769 = vmatprep.subr.mxu0 0.0
    %770 = vmatpush2.msra.mxu0 0.0
    %771 = vmatprep.subr.mxu0 0.0
    %772 = vmatpush2.msra.mxu0 0.0
    %773 = vmatprep.subr.mxu0 0.0
    %774 = vmatpush2.msra.mxu0 0.0
    %775 = vmatprep.subr.mxu0 0.0
    %776 = vmatpush2.msra.mxu0 0.0
    %777 = vmatprep.subr.mxu0 0.0
    %778 = vmatpush2.msra.mxu0 0.0
    %779 = vmatprep.subr.mxu0 0.0
    %780 = vmatpush2.msra.mxu0 0.0
    %781 = vmatprep.subr.mxu0 0.0
    %782 = vmatpush2.msra.mxu0 0.0
    %783 = vmatprep.subr.mxu0 0.0
    %784 = vmatpush2.msra.mxu0 0.0
    %785 = vmatprep.subr.mxu0 0.0
    %786 = vmatpush2.msra.mxu0 0.0
    %787 = vmatprep.subr.mxu0 0.0
    %788 = vmatpush2.msra.mxu0 0.0
    %789 = vmatprep.subr.mxu0 0.0
    %790 = vmatpush2.msra.mxu0 0.0
    %791 = vmatprep.subr.mxu0 0.0
    %792 = vmatpush2.msra.mxu0 0.0
    %793 = vmatprep.subr.mxu0 0.0
    %794 = vmatpush2.msra.mxu0 0.0
    %795 = vmatprep.subr.mxu0 0.0
    %796 = vmatpush2.msra.mxu0 0.0
    %797 = vmatprep.subr.mxu0 0.0
    %798 = vmatpush2.msra.mxu0 0.0
    %799 = vmatprep.mubr.f32.mxu0 0.0
    %800 = vmatmul.mubr.f32.gmra.mxu0 %v733
    %v801 = vpop.f32.mrf.mxu0
    %v802 = vadd.f32 0.0, %v801
    %v803 = vpop.f32.mrf.mxu0
    %804 = vdwg.mxu0
    %806 = vrot.lane.b32.xlu0 %v470, 8
    %v807 = vpop.permute.xlu0 %806
    %810 = vrot.lane.b32.xlu0 %v636, 16
    %v811 = vpop.permute.xlu0 %810
    %814 = vrot.lane.b32.xlu0 %v802, 24
    %v815 = vpop.permute.xlu0 %814
    %v817 = vsel %vm144, %v304, %v807
    %vm818 = vcmask 130048
    %v819 = vsel %vm818, %v817, %v811
    %vm820 = vcmask 195584
    %v821 = vsel %vm820, %v819, %v815
    %823 = vrot.lane.b32.xlu0 %v138, 96
    %v824 = vpop.permute.xlu0 %823
    %v825 = vsel %vm144, %v138, 0
    %v827 = vsel %vm144, %v824, 0
    %829 = vmatprep.subr.mxu0 0.0
    %830 = vmatpush1.xpose.msra.mxu0 0.0
    %831 = vmatprep.subr.mxu0 0.0
    %832 = vmatpush1.xpose.msra.mxu0 0.0
    %833 = vmatprep.subr.mxu0 0.0
    %834 = vmatpush1.xpose.msra.mxu0 0.0
    %835 = vmatprep.subr.mxu0 0.0
    %836 = vmatpush1.xpose.msra.mxu0 0.0
    %837 = vmatprep.subr.mxu0 0.0
    %838 = vmatpush1.xpose.msra.mxu0 0.0
    %839 = vmatprep.subr.mxu0 0.0
    %840 = vmatpush1.xpose.msra.mxu0 0.0
    %841 = vmatprep.subr.mxu0 0.0
    %842 = vmatpush1.xpose.msra.mxu0 0.0
    %843 = vmatprep.subr.mxu0 0.0
    %844 = vmatpush1.xpose.msra.mxu0 0.0
    %845 = vmatprep.subr.mxu0 0.0
    %846 = vmatpush1.xpose.msra.mxu0 0.0
    %847 = vmatprep.subr.mxu0 0.0
    %848 = vmatpush1.xpose.msra.mxu0 0.0
    %849 = vmatprep.subr.mxu0 0.0
    %850 = vmatpush1.xpose.msra.mxu0 0.0
    %851 = vmatprep.subr.mxu0 0.0
    %852 = vmatpush1.xpose.msra.mxu0 0.0
    %853 = vmatprep.subr.mxu0 0.0
    %854 = vmatpush1.xpose.msra.mxu0 0.0
    %855 = vmatprep.subr.mxu0 0.0
    %856 = vmatpush1.xpose.msra.mxu0 0.0
    %857 = vmatprep.subr.mxu0 0.0
    %858 = vmatpush1.xpose.msra.mxu0 0.0
    %859 = vmatprep.subr.mxu0 0.0
    %860 = vmatpush1.xpose.msra.mxu0 %v827
    %861 = vmatprep.subr.mxu0 0.0
    %862 = vmatpush2.xpose.msra.mxu0 0.0
    %863 = vmatprep.subr.mxu0 0.0
    %864 = vmatpush2.xpose.msra.mxu0 0.0
    %865 = vmatprep.subr.mxu0 0.0
    %866 = vmatpush2.xpose.msra.mxu0 0.0
    %867 = vmatprep.subr.mxu0 0.0
    %868 = vmatpush2.xpose.msra.mxu0 0.0
    %869 = vmatprep.subr.mxu0 0.0
    %870 = vmatpush2.xpose.msra.mxu0 0.0
    %871 = vmatprep.subr.mxu0 0.0
    %872 = vmatpush2.xpose.msra.mxu0 0.0
    %873 = vmatprep.subr.mxu0 0.0
    %874 = vmatpush2.xpose.msra.mxu0 0.0
    %875 = vmatprep.subr.mxu0 0.0
    %876 = vmatpush2.xpose.msra.mxu0 0.0
    %877 = vmatprep.subr.mxu0 0.0
    %878 = vmatpush2.xpose.msra.mxu0 0.0
    %879 = vmatprep.subr.mxu0 0.0
    %880 = vmatpush2.xpose.msra.mxu0 0.0
    %881 = vmatprep.subr.mxu0 0.0
    %882 = vmatpush2.xpose.msra.mxu0 0.0
    %883 = vmatprep.subr.mxu0 0.0
    %884 = vmatpush2.xpose.msra.mxu0 0.0
    %885 = vmatprep.subr.mxu0 0.0
    %886 = vmatpush2.xpose.msra.mxu0 0.0
    %887 = vmatprep.subr.mxu0 0.0
    %888 = vmatpush2.xpose.msra.mxu0 0.0
    %889 = vmatprep.subr.mxu0 0.0
    %890 = vmatpush2.xpose.msra.mxu0 0.0
    %891 = vmatprep.subr.mxu0 0.0
    %892 = vmatpush2.xpose.msra.mxu0 0.0
    %893 = vmatprep.mubr.f32.mxu0 0.0
    %894 = vmatmul.mubr.f32.gmra.mxu0 %v825
    %v895 = vpop.f32.mrf.mxu0
    %v896 = vadd.f32 0.0, %v895
    %v897 = vpop.f32.mrf.mxu0
    %898 = vdwg.mxu0
    %v899 = vmul.f32 %v896, 0.35355338
    %v900 = vsel %vm144, %v899, -inf
    %901 = vmax.xlane.f32.xlu0 %v900
    %v902 = vpop.xlane.xlu0 %901
    %v903 = vsub.f32 %v899, %v902
    %v904 = vmul.f32 %v903, 1.442695
    %v905 = vpow.pop %v904
    %v906 = vsel %vm144, %v905, 0.0
    %907 = vadd.xlane.f32.xlu0 %v906
    %v908 = vpop.xlane.xlu0 %907
    %v909 = vrcp.pop %v908
    %v910 = vmul.f32 %v905, %v909
    %911 = vrot.lane.b32.xlu0 %v138, 64
    %v912 = vpop.permute.xlu0 %911
    %v915 = vsel %vm144, %v910, 0
    %917 = vmatprep.subr.mxu0 0.0
    %918 = vmatpush1.msra.mxu0 0.0
    %919 = vmatprep.subr.mxu0 0.0
    %920 = vmatpush1.msra.mxu0 0.0
    %921 = vmatprep.subr.mxu0 0.0
    %922 = vmatpush1.msra.mxu0 0.0
    %923 = vmatprep.subr.mxu0 0.0
    %924 = vmatpush1.msra.mxu0 0.0
    %925 = vmatprep.subr.mxu0 0.0
    %926 = vmatpush1.msra.mxu0 0.0
    %927 = vmatprep.subr.mxu0 0.0
    %928 = vmatpush1.msra.mxu0 0.0
    %929 = vmatprep.subr.mxu0 0.0
    %930 = vmatpush1.msra.mxu0 0.0
    %931 = vmatprep.subr.mxu0 0.0
    %932 = vmatpush1.msra.mxu0 0.0
    %933 = vmatprep.subr.mxu0 0.0
    %934 = vmatpush1.msra.mxu0 0.0
    %935 = vmatprep.subr.mxu0 0.0
    %936 = vmatpush1.msra.mxu0 0.0
    %937 = vmatprep.subr.mxu0 0.0
    %938 = vmatpush1.msra.mxu0 0.0
    %939 = vmatprep.subr.mxu0 0.0
    %940 = vmatpush1.msra.mxu0 0.0
    %941 = vmatprep.subr.mxu0 0.0
    %942 = vmatpush1.msra.mxu0 0.0
    %943 = vmatprep.subr.mxu0 0.0
    %944 = vmatpush1.msra.mxu0 0.0
    %945 = vmatprep.subr.mxu0 0.0
    %946 = vmatpush1.msra.mxu0 0.0
    %947 = vmatprep.subr.mxu0 0.0
    %948 = vmatpush1.msra.mxu0 %v912
    %949 = vmatprep.subr.mxu0 0.0
    %950 = vmatpush2.msra.mxu0 0.0
    %951 = vmatprep.subr.mxu0 0.0
    %952 = vmatpush2.msra.mxu0 0.0
    %953 = vmatprep.subr.mxu0 0.0
    %954 = vmatpush2.msra.mxu0 0.0
    %955 = vmatprep.subr.mxu0 0.0
    %956 = vmatpush2.msra.mxu0 0.0
    %957 = vmatprep.subr.mxu0 0.0
    %958 = vmatpush2.msra.mxu0 0.0
    %959 = vmatprep.subr.mxu0 0.0
    %960 = vmatpush2.msra.mxu0 0.0
    %961 = vmatprep.subr.mxu0 0.0
    %962 = vmatpush2.msra.mxu0 0.0
    %963 = vmatprep.subr.mxu0 0.0
    %964 = vmatpush2.msra.mxu0 0.0
    %965 = vmatprep.subr.mxu0 0.0
    %966 = vmatpush2.msra.mxu0 0.0
    %967 = vmatprep.subr.mxu0 0.0
    %968 = vmatpush2.msra.mxu0 0.0
    %969 = vmatprep.subr.mxu0 0.0
    %970 = vmatpush2.msra.mxu0 0.0
    %971 = vmatprep.subr.mxu0 0.0
    %972 = vmatpush2.msra.mxu0 0.0
    %973 = vmatprep.subr.mxu0 0.0
    %974 = vmatpush2.msra.mxu0 0.0
    %975 = vmatprep.subr.mxu0 0.0
    %976 = vmatpush2.msra.mxu0 0.0
    %977 = vmatprep.subr.mxu0 0.0
    %978 = vmatpush2.msra.mxu0 0.0
    %979 = vmatprep.subr.mxu0 0.0
    %980 = vmatpush2.msra.mxu0 0.0
    %981 = vmatprep.mubr.f32.mxu0 0.0
    %982 = vmatmul.mubr.f32.gmra.mxu0 %v915
    %v983 = vpop.f32.mrf.mxu0
    %v984 = vadd.f32 0.0, %v983
    %v985 = vpop.f32.mrf.mxu0
    %986 = vdwg.mxu0
    %987 = vrot.lane.b32.xlu0 %v138, 120
    %v988 = vpop.permute.xlu0 %987
    %989 = vrot.lane.b32.xlu0 %v138, 88
    %v990 = vpop.permute.xlu0 %989
    %v991 = vsel %vm144, %v988, 0
    %v993 = vsel %vm144, %v990, 0
    %995 = vmatprep.subr.mxu0 0.0
    %996 = vmatpush1.xpose.msra.mxu0 0.0
    %997 = vmatprep.subr.mxu0 0.0
    %998 = vmatpush1.xpose.msra.mxu0 0.0
    %999 = vmatprep.subr.mxu0 0.0
    %1000 = vmatpush1.xpose.msra.mxu0 0.0
    %1001 = vmatprep.subr.mxu0 0.0
    %1002 = vmatpush1.xpose.msra.mxu0 0.0
    %1003 = vmatprep.subr.mxu0 0.0
    %1004 = vmatpush1.xpose.msra.mxu0 0.0
    %1005 = vmatprep.subr.mxu0 0.0
    %1006 = vmatpush1.xpose.msra.mxu0 0.0
    %1007 = vmatprep.subr.mxu0 0.0
    %1008 = vmatpush1.xpose.msra.mxu0 0.0
    %1009 = vmatprep.subr.mxu0 0.0
    %1010 = vmatpush1.xpose.msra.mxu0 0.0
    %1011 = vmatprep.subr.mxu0 0.0
    %1012 = vmatpush1.xpose.msra.mxu0 0.0
    %1013 = vmatprep.subr.mxu0 0.0
    %1014 = vmatpush1.xpose.msra.mxu0 0.0
    %1015 = vmatprep.subr.mxu0 0.0
    %1016 = vmatpush1.xpose.msra.mxu0 0.0
    %1017 = vmatprep.subr.mxu0 0.0
    %1018 = vmatpush1.xpose.msra.mxu0 0.0
    %1019 = vmatprep.subr.mxu0 0.0
    %1020 = vmatpush1.xpose.msra.mxu0 0.0
    %1021 = vmatprep.subr.mxu0 0.0
    %1022 = vmatpush1.xpose.msra.mxu0 0.0
    %1023 = vmatprep.subr.mxu0 0.0
    %1024 = vmatpush1.xpose.msra.mxu0 0.0
    %1025 = vmatprep.subr.mxu0 0.0
    %1026 = vmatpush1.xpose.msra.mxu0 %v993
    %1027 = vmatprep.subr.mxu0 0.0
    %1028 = vmatpush2.xpose.msra.mxu0 0.0
    %1029 = vmatprep.subr.mxu0 0.0
    %1030 = vmatpush2.xpose.msra.mxu0 0.0
    %1031 = vmatprep.subr.mxu0 0.0
    %1032 = vmatpush2.xpose.msra.mxu0 0.0
    %1033 = vmatprep.subr.mxu0 0.0
    %1034 = vmatpush2.xpose.msra.mxu0 0.0
    %1035 = vmatprep.subr.mxu0 0.0
    %1036 = vmatpush2.xpose.msra.mxu0 0.0
    %1037 = vmatprep.subr.mxu0 0.0
    %1038 = vmatpush2.xpose.msra.mxu0 0.0
    %1039 = vmatprep.subr.mxu0 0.0
    %1040 = vmatpush2.xpose.msra.mxu0 0.0
    %1041 = vmatprep.subr.mxu0 0.0
    %1042 = vmatpush2.xpose.msra.mxu0 0.0
    %1043 = vmatprep.subr.mxu0 0.0
    %1044 = vmatpush2.xpose.msra.mxu0 0.0
    %1045 = vmatprep.subr.mxu0 0.0
    %1046 = vmatpush2.xpose.msra.mxu0 0.0
    %1047 = vmatprep.subr.mxu0 0.0
    %1048 = vmatpush2.xpose.msra.mxu0 0.0
    %1049 = vmatprep.subr.mxu0 0.0
    %1050 = vmatpush2.xpose.msra.mxu0 0.0
    %1051 = vmatprep.subr.mxu0 0.0
    %1052 = vmatpush2.xpose.msra.mxu0 0.0
    %1053 = vmatprep.subr.mxu0 0.0
    %1054 = vmatpush2.xpose.msra.mxu0 0.0
    %1055 = vmatprep.subr.mxu0 0.0
    %1056 = vmatpush2.xpose.msra.mxu0 0.0
    %1057 = vmatprep.subr.mxu0 0.0
    %1058 = vmatpush2.xpose.msra.mxu0 0.0
    %1059 = vmatprep.mubr.f32.mxu0 0.0
    %1060 = vmatmul.mubr.f32.gmra.mxu0 %v991
    %v1061 = vpop.f32.mrf.mxu0
    %v1062 = vadd.f32 0.0, %v1061
    %v1063 = vpop.f32.mrf.mxu0
    %1064 = vdwg.mxu0
    %v1065 = vmul.f32 %v1062, 0.35355338
    %v1066 = vsel %vm144, %v1065, -inf
    %1067 = vmax.xlane.f32.xlu0 %v1066
    %v1068 = vpop.xlane.xlu0 %1067
    %v1069 = vsub.f32 %v1065, %v1068
    %v1070 = vmul.f32 %v1069, 1.442695
    %v1071 = vpow.pop %v1070
    %v1072 = vsel %vm144, %v1071, 0.0
    %1073 = vadd.xlane.f32.xlu0 %v1072
    %v1074 = vpop.xlane.xlu0 %1073
    %v1075 = vrcp.pop %v1074
    %v1076 = vmul.f32 %v1071, %v1075
    %1077 = vrot.lane.b32.xlu0 %v138, 56
    %v1078 = vpop.permute.xlu0 %1077
    %v1081 = vsel %vm144, %v1076, 0
    %1083 = vmatprep.subr.mxu0 0.0
    %1084 = vmatpush1.msra.mxu0 0.0
    %1085 = vmatprep.subr.mxu0 0.0
    %1086 = vmatpush1.msra.mxu0 0.0
    %1087 = vmatprep.subr.mxu0 0.0
    %1088 = vmatpush1.msra.mxu0 0.0
    %1089 = vmatprep.subr.mxu0 0.0
    %1090 = vmatpush1.msra.mxu0 0.0
    %1091 = vmatprep.subr.mxu0 0.0
    %1092 = vmatpush1.msra.mxu0 0.0
    %1093 = vmatprep.subr.mxu0 0.0
    %1094 = vmatpush1.msra.mxu0 0.0
    %1095 = vmatprep.subr.mxu0 0.0
    %1096 = vmatpush1.msra.mxu0 0.0
    %1097 = vmatprep.subr.mxu0 0.0
    %1098 = vmatpush1.msra.mxu0 0.0
    %1099 = vmatprep.subr.mxu0 0.0
    %1100 = vmatpush1.msra.mxu0 0.0
    %1101 = vmatprep.subr.mxu0 0.0
    %1102 = vmatpush1.msra.mxu0 0.0
    %1103 = vmatprep.subr.mxu0 0.0
    %1104 = vmatpush1.msra.mxu0 0.0
    %1105 = vmatprep.subr.mxu0 0.0
    %1106 = vmatpush1.msra.mxu0 0.0
    %1107 = vmatprep.subr.mxu0 0.0
    %1108 = vmatpush1.msra.mxu0 0.0
    %1109 = vmatprep.subr.mxu0 0.0
    %1110 = vmatpush1.msra.mxu0 0.0
    %1111 = vmatprep.subr.mxu0 0.0
    %1112 = vmatpush1.msra.mxu0 0.0
    %1113 = vmatprep.subr.mxu0 0.0
    %1114 = vmatpush1.msra.mxu0 %v1078
    %1115 = vmatprep.subr.mxu0 0.0
    %1116 = vmatpush2.msra.mxu0 0.0
    %1117 = vmatprep.subr.mxu0 0.0
    %1118 = vmatpush2.msra.mxu0 0.0
    %1119 = vmatprep.subr.mxu0 0.0
    %1120 = vmatpush2.msra.mxu0 0.0
    %1121 = vmatprep.subr.mxu0 0.0
    %1122 = vmatpush2.msra.mxu0 0.0
    %1123 = vmatprep.subr.mxu0 0.0
    %1124 = vmatpush2.msra.mxu0 0.0
    %1125 = vmatprep.subr.mxu0 0.0
    %1126 = vmatpush2.msra.mxu0 0.0
    %1127 = vmatprep.subr.mxu0 0.0
    %1128 = vmatpush2.msra.mxu0 0.0
    %1129 = vmatprep.subr.mxu0 0.0
    %1130 = vmatpush2.msra.mxu0 0.0
    %1131 = vmatprep.subr.mxu0 0.0
    %1132 = vmatpush2.msra.mxu0 0.0
    %1133 = vmatprep.subr.mxu0 0.0
    %1134 = vmatpush2.msra.mxu0 0.0
    %1135 = vmatprep.subr.mxu0 0.0
    %1136 = vmatpush2.msra.mxu0 0.0
    %1137 = vmatprep.subr.mxu0 0.0
    %1138 = vmatpush2.msra.mxu0 0.0
    %1139 = vmatprep.subr.mxu0 0.0
    %1140 = vmatpush2.msra.mxu0 0.0
    %1141 = vmatprep.subr.mxu0 0.0
    %1142 = vmatpush2.msra.mxu0 0.0
    %1143 = vmatprep.subr.mxu0 0.0
    %1144 = vmatpush2.msra.mxu0 0.0
    %1145 = vmatprep.subr.mxu0 0.0
    %1146 = vmatpush2.msra.mxu0 0.0
    %1147 = vmatprep.mubr.f32.mxu0 0.0
    %1148 = vmatmul.mubr.f32.gmra.mxu0 %v1081
    %v1149 = vpop.f32.mrf.mxu0
    %v1150 = vadd.f32 0.0, %v1149
    %v1151 = vpop.f32.mrf.mxu0
    %1152 = vdwg.mxu0
    %1153 = vrot.lane.b32.xlu0 %v138, 112
    %v1154 = vpop.permute.xlu0 %1153
    %1155 = vrot.lane.b32.xlu0 %v138, 80
    %v1156 = vpop.permute.xlu0 %1155
    %v1157 = vsel %vm144, %v1154, 0
    %v1159 = vsel %vm144, %v1156, 0
    %1161 = vmatprep.subr.mxu0 0.0
    %1162 = vmatpush1.xpose.msra.mxu0 0.0
    %1163 = vmatprep.subr.mxu0 0.0
    %1164 = vmatpush1.xpose.msra.mxu0 0.0
    %1165 = vmatprep.subr.mxu0 0.0
    %1166 = vmatpush1.xpose.msra.mxu0 0.0
    %1167 = vmatprep.subr.mxu0 0.0
    %1168 = vmatpush1.xpose.msra.mxu0 0.0
    %1169 = vmatprep.subr.mxu0 0.0
    %1170 = vmatpush1.xpose.msra.mxu0 0.0
    %1171 = vmatprep.subr.mxu0 0.0
    %1172 = vmatpush1.xpose.msra.mxu0 0.0
    %1173 = vmatprep.subr.mxu0 0.0
    %1174 = vmatpush1.xpose.msra.mxu0 0.0
    %1175 = vmatprep.subr.mxu0 0.0
    %1176 = vmatpush1.xpose.msra.mxu0 0.0
    %1177 = vmatprep.subr.mxu0 0.0
    %1178 = vmatpush1.xpose.msra.mxu0 0.0
    %1179 = vmatprep.subr.mxu0 0.0
    %1180 = vmatpush1.xpose.msra.mxu0 0.0
    %1181 = vmatprep.subr.mxu0 0.0
    %1182 = vmatpush1.xpose.msra.mxu0 0.0
    %1183 = vmatprep.subr.mxu0 0.0
    %1184 = vmatpush1.xpose.msra.mxu0 0.0
    %1185 = vmatprep.subr.mxu0 0.0
    %1186 = vmatpush1.xpose.msra.mxu0 0.0
    %1187 = vmatprep.subr.mxu0 0.0
    %1188 = vmatpush1.xpose.msra.mxu0 0.0
    %1189 = vmatprep.subr.mxu0 0.0
    %1190 = vmatpush1.xpose.msra.mxu0 0.0
    %1191 = vmatprep.subr.mxu0 0.0
    %1192 = vmatpush1.xpose.msra.mxu0 %v1159
    %1193 = vmatprep.subr.mxu0 0.0
    %1194 = vmatpush2.xpose.msra.mxu0 0.0
    %1195 = vmatprep.subr.mxu0 0.0
    %1196 = vmatpush2.xpose.msra.mxu0 0.0
    %1197 = vmatprep.subr.mxu0 0.0
    %1198 = vmatpush2.xpose.msra.mxu0 0.0
    %1199 = vmatprep.subr.mxu0 0.0
    %1200 = vmatpush2.xpose.msra.mxu0 0.0
    %1201 = vmatprep.subr.mxu0 0.0
    %1202 = vmatpush2.xpose.msra.mxu0 0.0
    %1203 = vmatprep.subr.mxu0 0.0
    %1204 = vmatpush2.xpose.msra.mxu0 0.0
    %1205 = vmatprep.subr.mxu0 0.0
    %1206 = vmatpush2.xpose.msra.mxu0 0.0
    %1207 = vmatprep.subr.mxu0 0.0
    %1208 = vmatpush2.xpose.msra.mxu0 0.0
    %1209 = vmatprep.subr.mxu0 0.0
    %1210 = vmatpush2.xpose.msra.mxu0 0.0
    %1211 = vmatprep.subr.mxu0 0.0
    %1212 = vmatpush2.xpose.msra.mxu0 0.0
    %1213 = vmatprep.subr.mxu0 0.0
    %1214 = vmatpush2.xpose.msra.mxu0 0.0
    %1215 = vmatprep.subr.mxu0 0.0
    %1216 = vmatpush2.xpose.msra.mxu0 0.0
    %1217 = vmatprep.subr.mxu0 0.0
    %1218 = vmatpush2.xpose.msra.mxu0 0.0
    %1219 = vmatprep.subr.mxu0 0.0
    %1220 = vmatpush2.xpose.msra.mxu0 0.0
    %1221 = vmatprep.subr.mxu0 0.0
    %1222 = vmatpush2.xpose.msra.mxu0 0.0
    %1223 = vmatprep.subr.mxu0 0.0
    %1224 = vmatpush2.xpose.msra.mxu0 0.0
    %1225 = vmatprep.mubr.f32.mxu0 0.0
    %1226 = vmatmul.mubr.f32.gmra.mxu0 %v1157
    %v1227 = vpop.f32.mrf.mxu0
    %v1228 = vadd.f32 0.0, %v1227
    %v1229 = vpop.f32.mrf.mxu0
    %1230 = vdwg.mxu0
    %v1231 = vmul.f32 %v1228, 0.35355338
    %v1232 = vsel %vm144, %v1231, -inf
    %1233 = vmax.xlane.f32.xlu0 %v1232
    %v1234 = vpop.xlane.xlu0 %1233
    %v1235 = vsub.f32 %v1231, %v1234
    %v1236 = vmul.f32 %v1235, 1.442695
    %v1237 = vpow.pop %v1236
    %v1238 = vsel %vm144, %v1237, 0.0
    %1239 = vadd.xlane.f32.xlu0 %v1238
    %v1240 = vpop.xlane.xlu0 %1239
    %v1241 = vrcp.pop %v1240
    %v1242 = vmul.f32 %v1237, %v1241
    %1243 = vrot.lane.b32.xlu0 %v138, 48
    %v1244 = vpop.permute.xlu0 %1243
    %v1247 = vsel %vm144, %v1242, 0
    %1249 = vmatprep.subr.mxu0 0.0
    %1250 = vmatpush1.msra.mxu0 0.0
    %1251 = vmatprep.subr.mxu0 0.0
    %1252 = vmatpush1.msra.mxu0 0.0
    %1253 = vmatprep.subr.mxu0 0.0
    %1254 = vmatpush1.msra.mxu0 0.0
    %1255 = vmatprep.subr.mxu0 0.0
    %1256 = vmatpush1.msra.mxu0 0.0
    %1257 = vmatprep.subr.mxu0 0.0
    %1258 = vmatpush1.msra.mxu0 0.0
    %1259 = vmatprep.subr.mxu0 0.0
    %1260 = vmatpush1.msra.mxu0 0.0
    %1261 = vmatprep.subr.mxu0 0.0
    %1262 = vmatpush1.msra.mxu0 0.0
    %1263 = vmatprep.subr.mxu0 0.0
    %1264 = vmatpush1.msra.mxu0 0.0
    %1265 = vmatprep.subr.mxu0 0.0
    %1266 = vmatpush1.msra.mxu0 0.0
    %1267 = vmatprep.subr.mxu0 0.0
    %1268 = vmatpush1.msra.mxu0 0.0
    %1269 = vmatprep.subr.mxu0 0.0
    %1270 = vmatpush1.msra.mxu0 0.0
    %1271 = vmatprep.subr.mxu0 0.0
    %1272 = vmatpush1.msra.mxu0 0.0
    %1273 = vmatprep.subr.mxu0 0.0
    %1274 = vmatpush1.msra.mxu0 0.0
    %1275 = vmatprep.subr.mxu0 0.0
    %1276 = vmatpush1.msra.mxu0 0.0
    %1277 = vmatprep.subr.mxu0 0.0
    %1278 = vmatpush1.msra.mxu0 0.0
    %1279 = vmatprep.subr.mxu0 0.0
    %1280 = vmatpush1.msra.mxu0 %v1244
    %1281 = vmatprep.subr.mxu0 0.0
    %1282 = vmatpush2.msra.mxu0 0.0
    %1283 = vmatprep.subr.mxu0 0.0
    %1284 = vmatpush2.msra.mxu0 0.0
    %1285 = vmatprep.subr.mxu0 0.0
    %1286 = vmatpush2.msra.mxu0 0.0
    %1287 = vmatprep.subr.mxu0 0.0
    %1288 = vmatpush2.msra.mxu0 0.0
    %1289 = vmatprep.subr.mxu0 0.0
    %1290 = vmatpush2.msra.mxu0 0.0
    %1291 = vmatprep.subr.mxu0 0.0
    %1292 = vmatpush2.msra.mxu0 0.0
    %1293 = vmatprep.subr.mxu0 0.0
    %1294 = vmatpush2.msra.mxu0 0.0
    %1295 = vmatprep.subr.mxu0 0.0
    %1296 = vmatpush2.msra.mxu0 0.0
    %1297 = vmatprep.subr.mxu0 0.0
    %1298 = vmatpush2.msra.mxu0 0.0
    %1299 = vmatprep.subr.mxu0 0.0
    %1300 = vmatpush2.msra.mxu0 0.0
    %1301 = vmatprep.subr.mxu0 0.0
    %1302 = vmatpush2.msra.mxu0 0.0
    %1303 = vmatprep.subr.mxu0 0.0
    %1304 = vmatpush2.msra.mxu0 0.0
    %1305 = vmatprep.subr.mxu0 0.0
    %1306 = vmatpush2.msra.mxu0 0.0
    %1307 = vmatprep.subr.mxu0 0.0
    %1308 = vmatpush2.msra.mxu0 0.0
    %1309 = vmatprep.subr.mxu0 0.0
    %1310 = vmatpush2.msra.mxu0 0.0
    %1311 = vmatprep.subr.mxu0 0.0
    %1312 = vmatpush2.msra.mxu0 0.0
    %1313 = vmatprep.mubr.f32.mxu0 0.0
    %1314 = vmatmul.mubr.f32.gmra.mxu0 %v1247
    %v1315 = vpop.f32.mrf.mxu0
    %v1316 = vadd.f32 0.0, %v1315
    %v1317 = vpop.f32.mrf.mxu0
    %1318 = vdwg.mxu0
    %1319 = vrot.lane.b32.xlu0 %v138, 104
    %v1320 = vpop.permute.xlu0 %1319
    %1321 = vrot.lane.b32.xlu0 %v138, 72
    %v1322 = vpop.permute.xlu0 %1321
    %v1323 = vsel %vm144, %v1320, 0
    %v1325 = vsel %vm144, %v1322, 0
    %1327 = vmatprep.subr.mxu0 0.0
    %1328 = vmatpush1.xpose.msra.mxu0 0.0
    %1329 = vmatprep.subr.mxu0 0.0
    %1330 = vmatpush1.xpose.msra.mxu0 0.0
    %1331 = vmatprep.subr.mxu0 0.0
    %1332 = vmatpush1.xpose.msra.mxu0 0.0
    %1333 = vmatprep.subr.mxu0 0.0
    %1334 = vmatpush1.xpose.msra.mxu0 0.0
    %1335 = vmatprep.subr.mxu0 0.0
    %1336 = vmatpush1.xpose.msra.mxu0 0.0
    %1337 = vmatprep.subr.mxu0 0.0
    %1338 = vmatpush1.xpose.msra.mxu0 0.0
    %1339 = vmatprep.subr.mxu0 0.0
    %1340 = vmatpush1.xpose.msra.mxu0 0.0
    %1341 = vmatprep.subr.mxu0 0.0
    %1342 = vmatpush1.xpose.msra.mxu0 0.0
    %1343 = vmatprep.subr.mxu0 0.0
    %1344 = vmatpush1.xpose.msra.mxu0 0.0
    %1345 = vmatprep.subr.mxu0 0.0
    %1346 = vmatpush1.xpose.msra.mxu0 0.0
    %1347 = vmatprep.subr.mxu0 0.0
    %1348 = vmatpush1.xpose.msra.mxu0 0.0
    %1349 = vmatprep.subr.mxu0 0.0
    %1350 = vmatpush1.xpose.msra.mxu0 0.0
    %1351 = vmatprep.subr.mxu0 0.0
    %1352 = vmatpush1.xpose.msra.mxu0 0.0
    %1353 = vmatprep.subr.mxu0 0.0
    %1354 = vmatpush1.xpose.msra.mxu0 0.0
    %1355 = vmatprep.subr.mxu0 0.0
    %1356 = vmatpush1.xpose.msra.mxu0 0.0
    %1357 = vmatprep.subr.mxu0 0.0
    %1358 = vmatpush1.xpose.msra.mxu0 %v1325
    %1359 = vmatprep.subr.mxu0 0.0
    %1360 = vmatpush2.xpose.msra.mxu0 0.0
    %1361 = vmatprep.subr.mxu0 0.0
    %1362 = vmatpush2.xpose.msra.mxu0 0.0
    %1363 = vmatprep.subr.mxu0 0.0
    %1364 = vmatpush2.xpose.msra.mxu0 0.0
    %1365 = vmatprep.subr.mxu0 0.0
    %1366 = vmatpush2.xpose.msra.mxu0 0.0
    %1367 = vmatprep.subr.mxu0 0.0
    %1368 = vmatpush2.xpose.msra.mxu0 0.0
    %1369 = vmatprep.subr.mxu0 0.0
    %1370 = vmatpush2.xpose.msra.mxu0 0.0
    %1371 = vmatprep.subr.mxu0 0.0
    %1372 = vmatpush2.xpose.msra.mxu0 0.0
    %1373 = vmatprep.subr.mxu0 0.0
    %1374 = vmatpush2.xpose.msra.mxu0 0.0
    %1375 = vmatprep.subr.mxu0 0.0
    %1376 = vmatpush2.xpose.msra.mxu0 0.0
    %1377 = vmatprep.subr.mxu0 0.0
    %1378 = vmatpush2.xpose.msra.mxu0 0.0
    %1379 = vmatprep.subr.mxu0 0.0
    %1380 = vmatpush2.xpose.msra.mxu0 0.0
    %1381 = vmatprep.subr.mxu0 0.0
    %1382 = vmatpush2.xpose.msra.mxu0 0.0
    %1383 = vmatprep.subr.mxu0 0.0
    %1384 = vmatpush2.xpose.msra.mxu0 0.0
    %1385 = vmatprep.subr.mxu0 0.0
    %1386 = vmatpush2.xpose.msra.mxu0 0.0
    %1387 = vmatprep.subr.mxu0 0.0
    %1388 = vmatpush2.xpose.msra.mxu0 0.0
    %1389 = vmatprep.subr.mxu0 0.0
    %1390 = vmatpush2.xpose.msra.mxu0 0.0
    %1391 = vmatprep.mubr.f32.mxu0 0.0
    %1392 = vmatmul.mubr.f32.gmra.mxu0 %v1323
    %v1393 = vpop.f32.mrf.mxu0
    %v1394 = vadd.f32 0.0, %v1393
    %v1395 = vpop.f32.mrf.mxu0
    %1396 = vdwg.mxu0
    %v1397 = vmul.f32 %v1394, 0.35355338
    %v1398 = vsel %vm144, %v1397, -inf
    %1399 = vmax.xlane.f32.xlu0 %v1398
    %v1400 = vpop.xlane.xlu0 %1399
    %v1401 = vsub.f32 %v1397, %v1400
    %v1402 = vmul.f32 %v1401, 1.442695
    %v1403 = vpow.pop %v1402
    %v1404 = vsel %vm144, %v1403, 0.0
    %1405 = vadd.xlane.f32.xlu0 %v1404
    %v1406 = vpop.xlane.xlu0 %1405
    %v1407 = vrcp.pop %v1406
    %v1408 = vmul.f32 %v1403, %v1407
    %1409 = vrot.lane.b32.xlu0 %v138, 40
    %v1410 = vpop.permute.xlu0 %1409
    %v1413 = vsel %vm144, %v1408, 0
    %1415 = vmatprep.subr.mxu0 0.0
    %1416 = vmatpush1.msra.mxu0 0.0
    %1417 = vmatprep.subr.mxu0 0.0
    %1418 = vmatpush1.msra.mxu0 0.0
    %1419 = vmatprep.subr.mxu0 0.0
    %1420 = vmatpush1.msra.mxu0 0.0
    %1421 = vmatprep.subr.mxu0 0.0
    %1422 = vmatpush1.msra.mxu0 0.0
    %1423 = vmatprep.subr.mxu0 0.0
    %1424 = vmatpush1.msra.mxu0 0.0
    %1425 = vmatprep.subr.mxu0 0.0
    %1426 = vmatpush1.msra.mxu0 0.0
    %1427 = vmatprep.subr.mxu0 0.0
    %1428 = vmatpush1.msra.mxu0 0.0
    %1429 = vmatprep.subr.mxu0 0.0
    %1430 = vmatpush1.msra.mxu0 0.0
    %1431 = vmatprep.subr.mxu0 0.0
    %1432 = vmatpush1.msra.mxu0 0.0
    %1433 = vmatprep.subr.mxu0 0.0
    %1434 = vmatpush1.msra.mxu0 0.0
    %1435 = vmatprep.subr.mxu0 0.0
    %1436 = vmatpush1.msra.mxu0 0.0
    %1437 = vmatprep.subr.mxu0 0.0
    %1438 = vmatpush1.msra.mxu0 0.0
    %1439 = vmatprep.subr.mxu0 0.0
    %1440 = vmatpush1.msra.mxu0 0.0
    %1441 = vmatprep.subr.mxu0 0.0
    %1442 = vmatpush1.msra.mxu0 0.0
    %1443 = vmatprep.subr.mxu0 0.0
    %1444 = vmatpush1.msra.mxu0 0.0
    %1445 = vmatprep.subr.mxu0 0.0
    %1446 = vmatpush1.msra.mxu0 %v1410
    %1447 = vmatprep.subr.mxu0 0.0
    %1448 = vmatpush2.msra.mxu0 0.0
    %1449 = vmatprep.subr.mxu0 0.0
    %1450 = vmatpush2.msra.mxu0 0.0
    %1451 = vmatprep.subr.mxu0 0.0
    %1452 = vmatpush2.msra.mxu0 0.0
    %1453 = vmatprep.subr.mxu0 0.0
    %1454 = vmatpush2.msra.mxu0 0.0
    %1455 = vmatprep.subr.mxu0 0.0
    %1456 = vmatpush2.msra.mxu0 0.0
    %1457 = vmatprep.subr.mxu0 0.0
    %1458 = vmatpush2.msra.mxu0 0.0
    %1459 = vmatprep.subr.mxu0 0.0
    %1460 = vmatpush2.msra.mxu0 0.0
    %1461 = vmatprep.subr.mxu0 0.0
    %1462 = vmatpush2.msra.mxu0 0.0
    %1463 = vmatprep.subr.mxu0 0.0
    %1464 = vmatpush2.msra.mxu0 0.0
    %1465 = vmatprep.subr.mxu0 0.0
    %1466 = vmatpush2.msra.mxu0 0.0
    %1467 = vmatprep.subr.mxu0 0.0
    %1468 = vmatpush2.msra.mxu0 0.0
    %1469 = vmatprep.subr.mxu0 0.0
    %1470 = vmatpush2.msra.mxu0 0.0
    %1471 = vmatprep.subr.mxu0 0.0
    %1472 = vmatpush2.msra.mxu0 0.0
    %1473 = vmatprep.subr.mxu0 0.0
    %1474 = vmatpush2.msra.mxu0 0.0
    %1475 = vmatprep.subr.mxu0 0.0
    %1476 = vmatpush2.msra.mxu0 0.0
    %1477 = vmatprep.subr.mxu0 0.0
    %1478 = vmatpush2.msra.mxu0 0.0
    %1479 = vmatprep.mubr.f32.mxu0 0.0
    %1480 = vmatmul.mubr.f32.gmra.mxu0 %v1413
    %v1481 = vpop.f32.mrf.mxu0
    %v1482 = vadd.f32 0.0, %v1481
    %v1483 = vpop.f32.mrf.mxu0
    %1484 = vdwg.mxu0
    %1486 = vrot.lane.b32.xlu0 %v1150, 8
    %v1487 = vpop.permute.xlu0 %1486
    %1490 = vrot.lane.b32.xlu0 %v1316, 16
    %v1491 = vpop.permute.xlu0 %1490
    %1494 = vrot.lane.b32.xlu0 %v1482, 24
    %v1495 = vpop.permute.xlu0 %1494
    %v1497 = vsel %vm144, %v984, %v1487
    %v1498 = vsel %vm818, %v1497, %v1491
    %v1499 = vsel %vm820, %v1498, %v1495
    %v1500 = vld [vmem:[%s2] sm:$0xff]
    %v1501 = vld [vmem:[%s2 + $0x8] sm:$0xff]
    %v1502 = vld [vmem:[%s2 + $0x10] sm:$0xff]
    %v1503 = vld [vmem:[%s2 + $0x18] sm:$0xff]
    %v1505 = vsel %vm59, %v821, 0
    %v1508 = vsel %vm59, %v1499, 0
    %1510 = vmatprep.subr.mxu0 0.0
    %1511 = vmatpush1.msra.mxu0 0.0
    %1512 = vmatprep.subr.mxu0 0.0
    %1513 = vmatpush1.msra.mxu0 0.0
    %1514 = vmatprep.subr.mxu0 0.0
    %1515 = vmatpush1.msra.mxu0 0.0
    %1516 = vmatprep.subr.mxu0 0.0
    %1517 = vmatpush1.msra.mxu0 0.0
    %1518 = vmatprep.subr.mxu0 0.0
    %1519 = vmatpush1.msra.mxu0 0.0
    %1520 = vmatprep.subr.mxu0 0.0
    %1521 = vmatpush1.msra.mxu0 0.0
    %1522 = vmatprep.subr.mxu0 0.0
    %1523 = vmatpush1.msra.mxu0 0.0
    %1524 = vmatprep.subr.mxu0 0.0
    %1525 = vmatpush1.msra.mxu0 0.0
    %1526 = vmatprep.subr.mxu0 0.0
    %1527 = vmatpush1.msra.mxu0 0.0
    %1528 = vmatprep.subr.mxu0 0.0
    %1529 = vmatpush1.msra.mxu0 0.0
    %1530 = vmatprep.subr.mxu0 0.0
    %1531 = vmatpush1.msra.mxu0 0.0
    %1532 = vmatprep.subr.mxu0 0.0
    %1533 = vmatpush1.msra.mxu0 0.0
    %1534 = vmatprep.subr.mxu0 0.0
    %1535 = vmatpush1.msra.mxu0 %v1503
    %1536 = vmatprep.subr.mxu0 0.0
    %1537 = vmatpush1.msra.mxu0 %v1502
    %1538 = vmatprep.subr.mxu0 0.0
    %1539 = vmatpush1.msra.mxu0 %v1501
    %1540 = vmatprep.subr.mxu0 0.0
    %1541 = vmatpush1.msra.mxu0 %v1500
    %1542 = vmatprep.subr.mxu0 0.0
    %1543 = vmatpush2.msra.mxu0 0.0
    %1544 = vmatprep.subr.mxu0 0.0
    %1545 = vmatpush2.msra.mxu0 0.0
    %1546 = vmatprep.subr.mxu0 0.0
    %1547 = vmatpush2.msra.mxu0 0.0
    %1548 = vmatprep.subr.mxu0 0.0
    %1549 = vmatpush2.msra.mxu0 0.0
    %1550 = vmatprep.subr.mxu0 0.0
    %1551 = vmatpush2.msra.mxu0 0.0
    %1552 = vmatprep.subr.mxu0 0.0
    %1553 = vmatpush2.msra.mxu0 0.0
    %1554 = vmatprep.subr.mxu0 0.0
    %1555 = vmatpush2.msra.mxu0 0.0
    %1556 = vmatprep.subr.mxu0 0.0
    %1557 = vmatpush2.msra.mxu0 0.0
    %1558 = vmatprep.subr.mxu0 0.0
    %1559 = vmatpush2.msra.mxu0 0.0
    %1560 = vmatprep.subr.mxu0 0.0
    %1561 = vmatpush2.msra.mxu0 0.0
    %1562 = vmatprep.subr.mxu0 0.0
    %1563 = vmatpush2.msra.mxu0 0.0
    %1564 = vmatprep.subr.mxu0 0.0
    %1565 = vmatpush2.msra.mxu0 0.0
    %1566 = vmatprep.subr.mxu0 0.0
    %1567 = vmatpush2.msra.mxu0 0.0
    %1568 = vmatprep.subr.mxu0 0.0
    %1569 = vmatpush2.msra.mxu0 0.0
    %1570 = vmatprep.subr.mxu0 0.0
    %1571 = vmatpush2.msra.mxu0 0.0
    %1572 = vmatprep.subr.mxu0 0.0
    %1573 = vmatpush2.msra.mxu0 0.0
    %1574 = vmatprep.mubr.f32.mxu0 0.0
    %1575 = vmatmul.mubr.f32.gmra.mxu0 %v1505
    %v1576 = vpop.f32.mrf.mxu0
    %v1577 = vadd.f32 0.0, %v1576
    %v1578 = vpop.f32.mrf.mxu0
    %1579 = vmatprep.mubr.f32.mxu0 0.0
    %1580 = vmatmul.mubr.f32.gmra.mxu0 %v1508
    %v1581 = vpop.f32.mrf.mxu0
    %v1582 = vadd.f32 0.0, %v1581
    %v1583 = vpop.f32.mrf.mxu0
    %1584 = vdwg.mxu0
    %v1585 = vadd.f32 %v53, %v1577
    %v1586 = vadd.f32 %v54, %v1582
    %v1587 = vsel %vm59, %v1585, 0.0
    %v1588 = vsel %vm59, %v1586, 0.0
    %v1589 = vadd.f32 %v1587, %v1588
    %v1590 = vrot.slane %v1589, 4
    %v1591 = vadd.f32 %v1589, %v1590
    %v1592 = vrot.slane %v1591, 2
    %v1593 = vadd.f32 %v1591, %v1592
    %v1594 = vrot.slane %v1593, 1
    %v1595 = vadd.f32 %v1593, %v1594
    %v1596 = vrcp.pop 16.0
    %v1597 = vmul.f32 %v1595, %v1596
    %v1598 = vsub.f32 %v1585, %v1597
    %v1599 = vsub.f32 %v1586, %v1597
    %v1600 = vmul.f32 %v1598, %v1598
    %v1601 = vmul.f32 %v1599, %v1599
    %v1602 = vsel %vm59, %v1600, 0.0
    %v1603 = vsel %vm59, %v1601, 0.0
    %v1604 = vadd.f32 %v1602, %v1603
    %v1605 = vrot.slane %v1604, 4
    %v1606 = vadd.f32 %v1604, %v1605
    %v1607 = vrot.slane %v1606, 2
    %v1608 = vadd.f32 %v1606, %v1607
    %v1609 = vrot.slane %v1608, 1
    %v1610 = vadd.f32 %v1608, %v1609
    %v1611 = vmul.f32 %v1610, %v1596
    %v1612 = vadd.f32 %v1611, 1e-05
    %v1613 = vrsqrt.pop %v1612
    %v1614 = vmul.f32 %v1598, %v1613
    %v1615 = vmul.f32 %v1599, %v1613
    %v1616 = vld [vmem:[%s3] sm:$0x1]
    %v1618 = vlaneseq
    %v1619 = vshrl.u32 %v1618, 7
    %v1620 = vsub.s32 0, %v1619
    %v1621 = vrot.slane %v1616, %v1620
    %v1623 = vmul.f32 %v1614, %v1621
    %v1624 = vmul.f32 %v1615, %v1621
    %v1625 = vld [vmem:[%s4] sm:$0x1]
    %v1627 = vlaneseq
    %v1628 = vshrl.u32 %v1627, 7
    %v1629 = vsub.s32 0, %v1628
    %v1630 = vrot.slane %v1625, %v1629
    %v1632 = vadd.f32 %v1623, %v1630
    %v1633 = vadd.f32 %v1624, %v1630
    %v1634 = vld [vmem:[%s5] sm:$0xff]
    %v1635 = vld [vmem:[%s5 + $0x8] sm:$0xff]
    %v1636 = vld [vmem:[%s5 + $0x10] sm:$0xff]
    %v1637 = vld [vmem:[%s5 + $0x18] sm:$0xff]
    %v1638 = vld [vmem:[%s6] sm:$0x1]
    %v1640 = vlaneseq
    %v1641 = vshrl.u32 %v1640, 7
    %v1642 = vsub.s32 0, %v1641
    %v1643 = vrot.slane %v1638, %v1642
    %v1646 = vsel %vm59, %v1632, 0
    %v1649 = vsel %vm59, %v1633, 0
    %1651 = vmatprep.subr.mxu0 0.0
    %1652 = vmatpush1.msra.mxu0 0.0
    %1653 = vmatprep.subr.mxu0 0.0
    %1654 = vmatpush1.msra.mxu0 0.0
    %1655 = vmatprep.subr.mxu0 0.0
    %1656 = vmatpush1.msra.mxu0 0.0
    %1657 = vmatprep.subr.mxu0 0.0
    %1658 = vmatpush1.msra.mxu0 0.0
    %1659 = vmatprep.subr.mxu0 0.0
    %1660 = vmatpush1.msra.mxu0 0.0
    %1661 = vmatprep.subr.mxu0 0.0
    %1662 = vmatpush1.msra.mxu0 0.0
    %1663 = vmatprep.subr.mxu0 0.0
    %1664 = vmatpush1.msra.mxu0 0.0
    %1665 = vmatprep.subr.mxu0 0.0
    %1666 = vmatpush1.msra.mxu0 0.0
    %1667 = vmatprep.subr.mxu0 0.0
    %1668 = vmatpush1.msra.mxu0 0.0
    %1669 = vmatprep.subr.mxu0 0.0
    %1670 = vmatpush1.msra.mxu0 0.0
    %1671 = vmatprep.subr.mxu0 0.0
    %1672 = vmatpush1.msra.mxu0 0.0
    %1673 = vmatprep.subr.mxu0 0.0
    %1674 = vmatpush1.msra.mxu0 0.0
    %1675 = vmatprep.subr.mxu0 0.0
    %1676 = vmatpush1.msra.mxu0 %v1637
    %1677 = vmatprep.subr.mxu0 0.0
    %1678 = vmatpush1.msra.mxu0 %v1636
    %1679 = vmatprep.subr.mxu0 0.0
    %1680 = vmatpush1.msra.mxu0 %v1635
    %1681 = vmatprep.subr.mxu0 0.0
    %1682 = vmatpush1.msra.mxu0 %v1634
    %1683 = vmatprep.subr.mxu0 0.0
    %1684 = vmatpush2.msra.mxu0 0.0
    %1685 = vmatprep.subr.mxu0 0.0
    %1686 = vmatpush2.msra.mxu0 0.0
    %1687 = vmatprep.subr.mxu0 0.0
    %1688 = vmatpush2.msra.mxu0 0.0
    %1689 = vmatprep.subr.mxu0 0.0
    %1690 = vmatpush2.msra.mxu0 0.0
    %1691 = vmatprep.subr.mxu0 0.0
    %1692 = vmatpush2.msra.mxu0 0.0
    %1693 = vmatprep.subr.mxu0 0.0
    %1694 = vmatpush2.msra.mxu0 0.0
    %1695 = vmatprep.subr.mxu0 0.0
    %1696 = vmatpush2.msra.mxu0 0.0
    %1697 = vmatprep.subr.mxu0 0.0
    %1698 = vmatpush2.msra.mxu0 0.0
    %1699 = vmatprep.subr.mxu0 0.0
    %1700 = vmatpush2.msra.mxu0 0.0
    %1701 = vmatprep.subr.mxu0 0.0
    %1702 = vmatpush2.msra.mxu0 0.0
    %1703 = vmatprep.subr.mxu0 0.0
    %1704 = vmatpush2.msra.mxu0 0.0
    %1705 = vmatprep.subr.mxu0 0.0
    %1706 = vmatpush2.msra.mxu0 0.0
    %1707 = vmatprep.subr.mxu0 0.0
    %1708 = vmatpush2.msra.mxu0 0.0
    %1709 = vmatprep.subr.mxu0 0.0
    %1710 = vmatpush2.msra.mxu0 0.0
    %1711 = vmatprep.subr.mxu0 0.0
    %1712 = vmatpush2.msra.mxu0 0.0
    %1713 = vmatprep.subr.mxu0 0.0
    %1714 = vmatpush2.msra.mxu0 0.0
    %1715 = vmatprep.mubr.f32.mxu0 0.0
    %1716 = vmatmul.mubr.f32.gmra.mxu0 %v1646
    %v1717 = vpop.f32.mrf.mxu0
    %v1718 = vadd.f32 %v1643, %v1717
    %v1719 = vpop.f32.mrf.mxu0
    %1720 = vmatprep.mubr.f32.mxu0 0.0
    %1721 = vmatmul.mubr.f32.gmra.mxu0 %v1649
    %v1722 = vpop.f32.mrf.mxu0
    %v1723 = vadd.f32 %v1643, %v1722
    %v1724 = vpop.f32.mrf.mxu0
    %1725 = vdwg.mxu0
    %v1726 = vmax.f32 %v1718, 0.0
    %v1727 = vmax.f32 %v1723, 0.0
    %v1728 = vld [vmem:[%s7] sm:$0xff]
    %v1729 = vld [vmem:[%s7 + $0x8] sm:$0xff]
    %v1730 = vld [vmem:[%s7 + $0x10] sm:$0xff]
    %v1731 = vld [vmem:[%s7 + $0x18] sm:$0xff]
    %v1732 = vld [vmem:[%s7 + $0x20] sm:$0xff]
    %v1733 = vld [vmem:[%s7 + $0x28] sm:$0xff]
    %v1734 = vld [vmem:[%s7 + $0x30] sm:$0xff]
    %v1735 = vld [vmem:[%s7 + $0x38] sm:$0xff]
    %v1736 = vld [vmem:[%s8] sm:$0x1]
    %v1738 = vlaneseq
    %v1739 = vshrl.u32 %v1738, 7
    %v1740 = vsub.s32 0, %v1739
    %v1741 = vrot.slane %v1736, %v1740
    %vm1743 = vcmask 523264
    %v1745 = vsel %vm1743, %v1726, 0
    %v1748 = vsel %vm1743, %v1727, 0
    %1750 = vmatprep.subr.mxu0 0.0
    %1751 = vmatpush1.msra.mxu0 0.0
    %1752 = vmatprep.subr.mxu0 0.0
    %1753 = vmatpush1.msra.mxu0 0.0
    %1754 = vmatprep.subr.mxu0 0.0
    %1755 = vmatpush1.msra.mxu0 0.0
    %1756 = vmatprep.subr.mxu0 0.0
    %1757 = vmatpush1.msra.mxu0 0.0
    %1758 = vmatprep.subr.mxu0 0.0
    %1759 = vmatpush1.msra.mxu0 0.0
    %1760 = vmatprep.subr.mxu0 0.0
    %1761 = vmatpush1.msra.mxu0 0.0
    %1762 = vmatprep.subr.mxu0 0.0
    %1763 = vmatpush1.msra.mxu0 0.0
    %1764 = vmatprep.subr.mxu0 0.0
    %1765 = vmatpush1.msra.mxu0 0.0
    %1766 = vmatprep.subr.mxu0 0.0
    %1767 = vmatpush1.msra.mxu0 %v1735
    %1768 = vmatprep.subr.mxu0 0.0
    %1769 = vmatpush1.msra.mxu0 %v1734
    %1770 = vmatprep.subr.mxu0 0.0
    %1771 = vmatpush1.msra.mxu0 %v1733
    %1772 = vmatprep.subr.mxu0 0.0
    %1773 = vmatpush1.msra.mxu0 %v1732
    %1774 = vmatprep.subr.mxu0 0.0
    %1775 = vmatpush1.msra.mxu0 %v1731
    %1776 = vmatprep.subr.mxu0 0.0
    %1777 = vmatpush1.msra.mxu0 %v1730
    %1778 = vmatprep.subr.mxu0 0.0
    %1779 = vmatpush1.msra.mxu0 %v1729
    %1780 = vmatprep.subr.mxu0 0.0
    %1781 = vmatpush1.msra.mxu0 %v1728
    %1782 = vmatprep.subr.mxu0 0.0
    %1783 = vmatpush2.msra.mxu0 0.0
    %1784 = vmatprep.subr.mxu0 0.0
    %1785 = vmatpush2.msra.mxu0 0.0
    %1786 = vmatprep.subr.mxu0 0.0
    %1787 = vmatpush2.msra.mxu0 0.0
    %1788 = vmatprep.subr.mxu0 0.0
    %1789 = vmatpush2.msra.mxu0 0.0
    %1790 = vmatprep.subr.mxu0 0.0
    %1791 = vmatpush2.msra.mxu0 0.0
    %1792 = vmatprep.subr.mxu0 0.0
    %1793 = vmatpush2.msra.mxu0 0.0
    %1794 = vmatprep.subr.mxu0 0.0
    %1795 = vmatpush2.msra.mxu0 0.0
    %1796 = vmatprep.subr.mxu0 0.0
    %1797 = vmatpush2.msra.mxu0 0.0
    %1798 = vmatprep.subr.mxu0 0.0
    %1799 = vmatpush2.msra.mxu0 0.0
    %1800 = vmatprep.subr.mxu0 0.0
    %1801 = vmatpush2.msra.mxu0 0.0
    %1802 = vmatprep.subr.mxu0 0.0
    %1803 = vmatpush2.msra.mxu0 0.0
    %1804 = vmatprep.subr.mxu0 0.0
    %1805 = vmatpush2.msra.mxu0 0.0
    %1806 = vmatprep.subr.mxu0 0.0
    %1807 = vmatpush2.msra.mxu0 0.0
    %1808 = vmatprep.subr.mxu0 0.0
    %1809 = vmatpush2.msra.mxu0 0.0
    %1810 = vmatprep.subr.mxu0 0.0
    %1811 = vmatpush2.msra.mxu0 0.0
    %1812 = vmatprep.subr.mxu0 0.0
    %1813 = vmatpush2.msra.mxu0 0.0
    %1814 = vmatprep.mubr.f32.mxu0 0.0
    %1815 = vmatmul.mubr.f32.gmra.mxu0 %v1745
    %v1816 = vpop.f32.mrf.mxu0
    %v1817 = vadd.f32 %v1741, %v1816
    %v1818 = vpop.f32.mrf.mxu0
    %1819 = vmatprep.mubr.f32.mxu0 0.0
    %1820 = vmatmul.mubr.f32.gmra.mxu0 %v1748
    %v1821 = vpop.f32.mrf.mxu0
    %v1822 = vadd.f32 %v1741, %v1821
    %v1823 = vpop.f32.mrf.mxu0
    %1824 = vdwg.mxu0
    %v1825 = vadd.f32 %v1632, %v1817
    %v1826 = vadd.f32 %v1633, %v1822
    %v1827 = vsel %vm59, %v1825, 0.0
    %v1828 = vsel %vm59, %v1826, 0.0
    %v1829 = vadd.f32 %v1827, %v1828
    %v1830 = vrot.slane %v1829, 4
    %v1831 = vadd.f32 %v1829, %v1830
    %v1832 = vrot.slane %v1831, 2
    %v1833 = vadd.f32 %v1831, %v1832
    %v1834 = vrot.slane %v1833, 1
    %v1835 = vadd.f32 %v1833, %v1834
    %v1836 = vmul.f32 %v1835, %v1596
    %v1837 = vsub.f32 %v1825, %v1836
    %v1838 = vsub.f32 %v1826, %v1836
    %v1839 = vmul.f32 %v1837, %v1837
    %v1840 = vmul.f32 %v1838, %v1838
    %v1841 = vsel %vm59, %v1839, 0.0
    %v1842 = vsel %vm59, %v1840, 0.0
    %v1843 = vadd.f32 %v1841, %v1842
    %v1844 = vrot.slane %v1843, 4
    %v1845 = vadd.f32 %v1843, %v1844
    %v1846 = vrot.slane %v1845, 2
    %v1847 = vadd.f32 %v1845, %v1846
    %v1848 = vrot.slane %v1847, 1
    %v1849 = vadd.f32 %v1847, %v1848
    %v1850 = vmul.f32 %v1849, %v1596
    %v1851 = vadd.f32 %v1850, 1e-05
    %v1852 = vrsqrt.pop %v1851
    %v1853 = vmul.f32 %v1837, %v1852
    %v1854 = vmul.f32 %v1838, %v1852
    %v1855 = vld [vmem:[%s9] sm:$0x1]
    %v1857 = vlaneseq
    %v1858 = vshrl.u32 %v1857, 7
    %v1859 = vsub.s32 0, %v1858
    %v1860 = vrot.slane %v1855, %v1859
    %v1862 = vmul.f32 %v1853, %v1860
    %v1863 = vmul.f32 %v1854, %v1860
    %v1864 = vld [vmem:[%s10] sm:$0x1]
    %v1866 = vlaneseq
    %v1867 = vshrl.u32 %v1866, 7
    %v1868 = vsub.s32 0, %v1867
    %v1869 = vrot.slane %v1864, %v1868
    %v1871 = vadd.f32 %v1862, %v1869
    %v1872 = vadd.f32 %v1863, %v1869
    %1873 = vst.msk [vmem:[#allocation5] sm:$0xff] %vm59, %v1871
    %1874 = vst.msk [vmem:[#allocation5 + $0x8] sm:$0xff] %vm59, %v1872
    // Predicated region
    $region50: #{tpu_custom_call.1} parent=1 // pred_check
      _
    $region51: #{tpu_custom_call.1} parent=1 // pred_check_branch
      %1876 = sbr.rel (0) target = $region53
    $region52: #{tpu_custom_call.1} parent=1 // pred_region
      %s1878 = ssub.s32 256, 256
      %1879 = vsyncadd [#allocation4], %s1878
      %s1880 = sshll.u32 [#allocation5], 4
      %s1881 = int_to_ptr.vmem [resolvable:$true] %s1880
      %1886 = dma.vmem_to_hbm [thread:$0]  %s1881, 256, %s11, [#allocation4], 128, 128, 8
    $region53: #{tpu_custom_call.1} parent=1 // pred_fallthru
      _
    // Predicated region
    $region54: #{tpu_custom_call.1} parent=1 // pred_check
      _
    $region55: #{tpu_custom_call.1} parent=1 // pred_check_branch
      %1888 = sbr.rel (0) target = $region57
    $region56: #{tpu_custom_call.1} parent=1 // pred_region
      %1889 = dma.done [#allocation4], 256
    $region57: #{tpu_custom_call.1} parent=1 // pred_fallthru
      _
    %1890 = vsyncpa [#allocation3], 1
    %1891 = vsyncpa [#allocation4], 1

</llo_original>
